<compile_context>
chip_gen: v5e
topology: v5e:2x2
jax: 0.10.0
libtpu: 0.0.40
codegen_flags: <defaults>
</compile_context>

<pallas_src>
import math

import jax
import jax.numpy as jnp
from jax import lax
from jax.experimental import pallas as pl
from jax.experimental.pallas import tpu as pltpu


_INV_SQRT2 = 0.7071067811865476  # float32 sqrt(0.5), matches torch.sqrt(tensor(0.5))
_CONTRACT_RHS_DIM1 = (((1,), (1,)), ((), ()))  # lhs @ rhs.T without a transpose


def _tabnet_decoder_kernel(x_ref, w_ref, s_ref, b_ref, wr_ref, o_ref):
    # x_ref : (n_steps, TB, d)            encoder step outputs (batch tile)
    # w_ref : (n_steps, n_glu, 2, d, d)   per-layer FC weights, torch (out,in)
    #                                     layout, split into [0]=linear, [1]=gate
    # s_ref : (n_steps, n_glu, 2, 1, d)   folded eval-mode BN scale
    # b_ref : (n_steps, n_glu, 2, 1, d)   folded eval-mode BN shift
    # wr_ref: (embed_dim, d)              reconstruction weight, torch layout
    # o_ref : (TB, embed_dim)
    n_steps = x_ref.shape[0]
    n_glu = w_ref.shape[1]
    scale = jnp.float32(_INV_SQRT2)

    acc = None
    for i in range(n_steps):                      # static unroll: tiny trip counts
        h = x_ref[i].astype(jnp.float32)          # (TB, d)
        for j in range(n_glu):
            w_lin = w_ref[i, j, 0].astype(jnp.float32)   # (d, d)
            w_gate = w_ref[i, j, 1].astype(jnp.float32)  # (d, d)
            # bias-free FC halves: h @ W.T via dot_general (no host transpose)
            z_lin = lax.dot_general(h, w_lin, _CONTRACT_RHS_DIM1,
                                    preferred_element_type=jnp.float32)
            z_gate = lax.dot_general(h, w_gate, _CONTRACT_RHS_DIM1,
                                     preferred_element_type=jnp.float32)
            # folded (ghost) batch-norm affine, eval-mode
            z_lin = z_lin * s_ref[i, j, 0] + b_ref[i, j, 0]
            z_gate = z_gate * s_ref[i, j, 1] + b_ref[i, j, 1]
            g = z_lin * jax.nn.sigmoid(z_gate)    # GLU
            # residual + sqrt(0.5) scaling on every layer except the very first
            h = g if j == 0 else (h + g) * scale
        acc = h if i == 0 else acc + h            # sum over decision steps

    out = lax.dot_general(acc, wr_ref[...].astype(jnp.float32),
                          _CONTRACT_RHS_DIM1,
                          preferred_element_type=jnp.float32)
    o_ref[...] = out.astype(o_ref.dtype)


def tabnet_decoder_forward(xs, w_glu, bn_scale, bn_shift, w_rec, *, block_batch=1024):
    """Fused Pallas forward of TabNetDecoder (eval mode).

    Args:
      xs:       (n_steps, batch, step_dim) stacked encoder-step outputs.
      w_glu:    (n_steps, n_glu, 2, step_dim, step_dim) prepared FC weights.
      bn_scale: (n_steps, n_glu, 2, 1, step_dim) folded BN scale.
      bn_shift: (n_steps, n_glu, 2, 1, step_dim) folded BN shift.
      w_rec:    (embed_dim, step_dim) reconstruction weight (torch layout).
    Returns:
      (batch, embed_dim) reconstructed embeddings.
    """
    n_steps, batch, d = xs.shape
    n_glu = w_glu.shape[1]
    embed_dim = w_rec.shape[0]
    out_dtype = xs.dtype

    # Batch tiling: one full-batch tile for small batches, otherwise tiles of
    # `block_batch` rows (multiple of 8 sublanes; sized well under the 32 MiB
    # scoped / 64 MiB physical VMEM budget of v7x even with double buffering).
    if batch <= block_batch:
        tb, pad = batch, 0
    else:
        tb = block_batch
        pad = (-batch) % tb
    if pad:
        xs = jnp.pad(xs, ((0, 0), (0, pad), (0, 0)))
    pb = batch + pad
    grid = (pb // tb,)

    itemsize = jnp.dtype(xs.dtype).itemsize
    cost = pl.CostEstimate(
        flops=int(2 * pb * (n_steps * n_glu * 2 * d * d + d * embed_dim)),
        transcendentals=int(pb * n_steps * n_glu * d),
        bytes_accessed=int(
            itemsize * (xs.size + w_glu.size + bn_scale.size + bn_shift.size + w_rec.size)
            + itemsize * pb * embed_dim
        ),
    )

    out = pl.pallas_call(
        _tabnet_decoder_kernel,
        out_shape=jax.ShapeDtypeStruct((pb, embed_dim), out_dtype),
        grid=grid,
        in_specs=[
            pl.BlockSpec((n_steps, tb, d), lambda b: (0, b, 0)),
            # weights / BN params: constant index_map -> stay VMEM-resident
            pl.BlockSpec(w_glu.shape, lambda b: (0, 0, 0, 0, 0)),
            pl.BlockSpec(bn_scale.shape, lambda b: (0, 0, 0, 0, 0)),
            pl.BlockSpec(bn_shift.shape, lambda b: (0, 0, 0, 0, 0)),
            pl.BlockSpec(w_rec.shape, lambda b: (0, 0)),
        ],
        out_specs=pl.BlockSpec((tb, embed_dim), lambda b: (b, 0)),
        compiler_params=pltpu.CompilerParams(
            dimension_semantics=("parallel",),
        ),
        cost_estimate=cost,
    )(xs, w_glu, bn_scale, bn_shift, w_rec)

    if pad:
        out = out[:batch]
    return out


# ---------------------------------------------------------------------------
# One-time parameter preparation (the "at init time" transforms from the
# review: replicate the shared FCs per step, split GLU halves, fold BN).
# ---------------------------------------------------------------------------
def fold_batchnorm(gamma, beta, mean, var, eps=1e-5):
    scale = gamma / jnp.sqrt(var + eps)
    shift = beta - mean * scale
    return scale, shift


def prepare_tabnet_decoder_params(shared_w, step_w, bn_gamma, bn_beta, bn_mean,
                                  bn_var, w_rec, eps=1e-5):
    # shared_w: (n_shared, 2d, d)   step_w: (n_steps, n_dep, 2d, d)
    n_steps, n_dep = step_w.shape[:2]
    n_shared = shared_w.shape[0]
    d = step_w.shape[-1]
    n_glu = n_shared + n_dep

    shared_rep = jnp.broadcast_to(shared_w[None], (n_steps, n_shared, 2 * d, d))
    w_all = jnp.concatenate([shared_rep, step_w], axis=1)       # (n_steps, n_glu, 2d, d)
    w_split = w_all.reshape(n_steps, n_glu, 2, d, d)            # [0]=linear rows, [1]=gate rows

    scale, shift = fold_batchnorm(bn_gamma, bn_beta, bn_mean, bn_var, eps)  # (n_steps, n_glu, 2d)
    s_split = scale.reshape(n_steps, n_glu, 2, 1, d)
    b_split = shift.reshape(n_steps, n_glu, 2, 1, d)
    return w_split, s_split, b_split, w_rec


# ---------------------------------------------------------------------------
# Pure-JAX reference mirroring the PyTorch module (eval mode), computed from
# the raw (unfused) parameters.
# ---------------------------------------------------------------------------
def tabnet_decoder_reference(xs, shared_w, step_w, bn_gamma, bn_beta, bn_mean,
                             bn_var, w_rec, eps=1e-5):
    n_steps, batch, d = xs.shape
    n_shared = shared_w.shape[0]
    n_dep = step_w.shape[1]
    inv_sqrt2 = jnp.float32(_INV_SQRT2)

    out = jnp.zeros((batch, d), jnp.float32)
    for i in range(n_steps):
        h = xs[i].astype(jnp.float32)
        for j in range(n_shared + n_dep):
            w = shared_w[j] if j < n_shared else step_w[i, j - n_shared]
            z = h @ w.T
            z = (z - bn_mean[i, j]) / jnp.sqrt(bn_var[i, j] + eps) * bn_gamma[i, j] + bn_beta[i, j]
            g = z[:, :d] * jax.nn.sigmoid(z[:, d:])
            h = g if j == 0 else (h + g) * inv_sqrt2
        out = out + h
    return out @ w_rec.T


if __name__ == "__main__":
    key = jax.random.PRNGKey(0)
    ks = jax.random.split(key, 10)

    # Small shapes consistent with the module defaults / docstring example.
    batch, step_dim, embed_dim = 3, 8, 32
    n_steps, n_shared, n_dep = 3, 2, 2
    n_glu = n_shared + n_dep
    d2 = 2 * step_dim

    # Encoder step outputs (the torch module takes a list; we stack it).
    xs = jax.random.normal(ks[0], (n_steps, batch, step_dim), jnp.float32)

    # GLU FC weights (torch nn.Linear (out, in) layout, bias-free), glu init gain.
    glu_gain = math.sqrt((step_dim + d2) / math.sqrt(4 * step_dim))
    glu_std = glu_gain * math.sqrt(2.0 / (step_dim + d2))
    shared_w = glu_std * jax.random.normal(ks[1], (n_shared, d2, step_dim), jnp.float32)
    step_w = glu_std * jax.random.normal(ks[2], (n_steps, n_dep, d2, step_dim), jnp.float32)

    # Per-layer, per-step BatchNorm parameters (eval-mode running stats).
    bn_gamma = 1.0 + 0.1 * jax.random.normal(ks[3], (n_steps, n_glu, d2), jnp.float32)
    bn_beta = 0.1 * jax.random.normal(ks[4], (n_steps, n_glu, d2), jnp.float32)
    bn_mean = 0.1 * jax.random.normal(ks[5], (n_steps, n_glu, d2), jnp.float32)
    bn_var = jax.random.uniform(ks[6], (n_steps, n_glu, d2), jnp.float32, 0.5, 1.5)

    # Reconstruction layer, initialize_non_glu gain.
    rec_gain = math.sqrt((step_dim + embed_dim) / math.sqrt(step_dim))
    rec_std = rec_gain * math.sqrt(2.0 / (step_dim + embed_dim))
    w_rec = rec_std * jax.random.normal(ks[7], (embed_dim, step_dim), jnp.float32)

    # One-time parameter preparation, then the fused kernel.
    w_split, s_split, b_split, w_rec_p = prepare_tabnet_decoder_params(
        shared_w, step_w, bn_gamma, bn_beta, bn_mean, bn_var, w_rec)

    out = tabnet_decoder_forward(xs, w_split, s_split, b_split, w_rec_p)
    jax.block_until_ready(out)

    ref = tabnet_decoder_reference(xs, shared_w, step_w, bn_gamma, bn_beta,
                                   bn_mean, bn_var, w_rec)
    assert out.shape == (batch, embed_dim)
    assert jnp.allclose(out, ref, atol=1e-4, rtol=1e-4)

    # Also exercise the batch-tiled (grid > 1) + padding path.
    big_batch = 600
    xs_big = jax.random.normal(ks[8], (n_steps, big_batch, step_dim), jnp.float32)
    out_big = tabnet_decoder_forward(xs_big, w_split, s_split, b_split, w_rec_p,
                                     block_batch=256)
    jax.block_until_ready(out_big)
    ref_big = tabnet_decoder_reference(xs_big, shared_w, step_w, bn_gamma, bn_beta,
                                       bn_mean, bn_var, w_rec)
    assert out_big.shape == (big_batch, embed_dim)
    assert jnp.allclose(out_big, ref_big, atol=1e-4, rtol=1e-4)

    print("KERNEL_OK")
</pallas_src>

<mosaic_0001>
module attributes {stable_mosaic.version = 11 : i64} {
  func.func @_tabnet_decoder_kernel(%arg0: i32, %arg1: memref<3x3x8xf32, #tpu.memory_space<vmem>>, %arg2: memref<3x4x2x8x8xf32, #tpu.memory_space<vmem>>, %arg3: memref<3x4x2x1x8xf32, #tpu.memory_space<vmem>>, %arg4: memref<3x4x2x1x8xf32, #tpu.memory_space<vmem>>, %arg5: memref<32x8xf32, #tpu.memory_space<vmem>>, %arg6: memref<3x32xf32, #tpu.memory_space<vmem>>) attributes {dimension_semantics = [#tpu.dimension_semantics<parallel>], iteration_bounds = array<i64: 1>, scalar_prefetch = 0 : i64, scratch_operands = 0 : i64, tpu.core_type = #tpu.core_type<tc>, window_params = [{transform_indices = @transform_0, window_bounds = array<i64: 3, 3, 8>}, {pipeline_mode = #tpu.pipeline_mode<synchronous>, transform_indices = @transform_1, window_bounds = array<i64: 3, 4, 2, 8, 8>}, {pipeline_mode = #tpu.pipeline_mode<synchronous>, transform_indices = @transform_2, window_bounds = array<i64: 3, 4, 2, 1, 8>}, {pipeline_mode = #tpu.pipeline_mode<synchronous>, transform_indices = @transform_3, window_bounds = array<i64: 3, 4, 2, 1, 8>}, {pipeline_mode = #tpu.pipeline_mode<synchronous>, transform_indices = @transform_4, window_bounds = array<i64: 32, 8>}, {transform_indices = @transform_5, window_bounds = array<i64: 3, 32>}]} {
    %c0 = arith.constant 0 : index
    %c0_0 = arith.constant 0 : index
    %c0_1 = arith.constant 0 : index
    %0 = vector.load %arg1[%c0, %c0_0, %c0_1] : memref<3x3x8xf32, #tpu.memory_space<vmem>>, vector<1x3x8xf32>
    %1 = vector.shape_cast %0 : vector<1x3x8xf32> to vector<3x8xf32>
    %c0_2 = arith.constant 0 : index
    %c0_3 = arith.constant 0 : index
    %c0_4 = arith.constant 0 : index
    %c0_5 = arith.constant 0 : index
    %c0_6 = arith.constant 0 : index
    %2 = vector.load %arg2[%c0_2, %c0_3, %c0_4, %c0_5, %c0_6] : memref<3x4x2x8x8xf32, #tpu.memory_space<vmem>>, vector<1x1x1x8x8xf32>
    %3 = vector.shape_cast %2 : vector<1x1x1x8x8xf32> to vector<8x8xf32>
    %c0_7 = arith.constant 0 : index
    %c0_8 = arith.constant 0 : index
    %c1 = arith.constant 1 : index
    %c0_9 = arith.constant 0 : index
    %c0_10 = arith.constant 0 : index
    %4 = vector.load %arg2[%c0_7, %c0_8, %c1, %c0_9, %c0_10] : memref<3x4x2x8x8xf32, #tpu.memory_space<vmem>>, vector<1x1x1x8x8xf32>
    %5 = vector.shape_cast %4 : vector<1x1x1x8x8xf32> to vector<8x8xf32>
    %cst = arith.constant dense<0.000000e+00> : vector<3x8xf32>
    %6 = tpu.matmul %1, %3, %cst {dimension_numbers = #tpu.dot_dimension_numbers<[1], [1], [0], [0], [0, 0, 1, 0], [], []>} : vector<3x8xf32>, vector<8x8xf32>, vector<3x8xf32> -> vector<3x8xf32>
    %cst_11 = arith.constant dense<0.000000e+00> : vector<3x8xf32>
    %7 = tpu.matmul %1, %5, %cst_11 {dimension_numbers = #tpu.dot_dimension_numbers<[1], [1], [0], [0], [0, 0, 1, 0], [], []>} : vector<3x8xf32>, vector<8x8xf32>, vector<3x8xf32> -> vector<3x8xf32>
    %c0_12 = arith.constant 0 : index
    %c0_13 = arith.constant 0 : index
    %c0_14 = arith.constant 0 : index
    %c0_15 = arith.constant 0 : index
    %c0_16 = arith.constant 0 : index
    %8 = vector.load %arg3[%c0_12, %c0_13, %c0_14, %c0_15, %c0_16] : memref<3x4x2x1x8xf32, #tpu.memory_space<vmem>>, vector<1x1x1x1x8xf32>
    %9 = vector.shape_cast %8 : vector<1x1x1x1x8xf32> to vector<1x8xf32>
    %10 = vector.broadcast %9 : vector<1x8xf32> to vector<3x8xf32>
    %11 = arith.mulf %6, %10 : vector<3x8xf32>
    %c0_17 = arith.constant 0 : index
    %c0_18 = arith.constant 0 : index
    %c0_19 = arith.constant 0 : index
    %c0_20 = arith.constant 0 : index
    %c0_21 = arith.constant 0 : index
    %12 = vector.load %arg4[%c0_17, %c0_18, %c0_19, %c0_20, %c0_21] : memref<3x4x2x1x8xf32, #tpu.memory_space<vmem>>, vector<1x1x1x1x8xf32>
    %13 = vector.shape_cast %12 : vector<1x1x1x1x8xf32> to vector<1x8xf32>
    %14 = vector.broadcast %13 : vector<1x8xf32> to vector<3x8xf32>
    %15 = arith.addf %11, %14 : vector<3x8xf32>
    %c0_22 = arith.constant 0 : index
    %c0_23 = arith.constant 0 : index
    %c1_24 = arith.constant 1 : index
    %c0_25 = arith.constant 0 : index
    %c0_26 = arith.constant 0 : index
    %16 = vector.load %arg3[%c0_22, %c0_23, %c1_24, %c0_25, %c0_26] : memref<3x4x2x1x8xf32, #tpu.memory_space<vmem>>, vector<1x1x1x1x8xf32>
    %17 = vector.shape_cast %16 : vector<1x1x1x1x8xf32> to vector<1x8xf32>
    %18 = vector.broadcast %17 : vector<1x8xf32> to vector<3x8xf32>
    %19 = arith.mulf %7, %18 : vector<3x8xf32>
    %c0_27 = arith.constant 0 : index
    %c0_28 = arith.constant 0 : index
    %c1_29 = arith.constant 1 : index
    %c0_30 = arith.constant 0 : index
    %c0_31 = arith.constant 0 : index
    %20 = vector.load %arg4[%c0_27, %c0_28, %c1_29, %c0_30, %c0_31] : memref<3x4x2x1x8xf32, #tpu.memory_space<vmem>>, vector<1x1x1x1x8xf32>
    %21 = vector.shape_cast %20 : vector<1x1x1x1x8xf32> to vector<1x8xf32>
    %22 = vector.broadcast %21 : vector<1x8xf32> to vector<3x8xf32>
    %23 = arith.addf %19, %22 : vector<3x8xf32>
    %24 = arith.negf %23 : vector<3x8xf32>
    %25 = math.exp %24 : vector<3x8xf32>
    %cst_32 = arith.constant 1.000000e+00 : f32
    %26 = vector.broadcast %cst_32 : f32 to vector<3x8xf32>
    %27 = arith.addf %26, %25 : vector<3x8xf32>
    %28 = arith.divf %26, %27 : vector<3x8xf32>
    %29 = arith.mulf %15, %28 : vector<3x8xf32>
    %c0_33 = arith.constant 0 : index
    %c1_34 = arith.constant 1 : index
    %c0_35 = arith.constant 0 : index
    %c0_36 = arith.constant 0 : index
    %c0_37 = arith.constant 0 : index
    %30 = vector.load %arg2[%c0_33, %c1_34, %c0_35, %c0_36, %c0_37] : memref<3x4x2x8x8xf32, #tpu.memory_space<vmem>>, vector<1x1x1x8x8xf32>
    %31 = vector.shape_cast %30 : vector<1x1x1x8x8xf32> to vector<8x8xf32>
    %c0_38 = arith.constant 0 : index
    %c1_39 = arith.constant 1 : index
    %c1_40 = arith.constant 1 : index
    %c0_41 = arith.constant 0 : index
    %c0_42 = arith.constant 0 : index
    %32 = vector.load %arg2[%c0_38, %c1_39, %c1_40, %c0_41, %c0_42] : memref<3x4x2x8x8xf32, #tpu.memory_space<vmem>>, vector<1x1x1x8x8xf32>
    %33 = vector.shape_cast %32 : vector<1x1x1x8x8xf32> to vector<8x8xf32>
    %cst_43 = arith.constant dense<0.000000e+00> : vector<3x8xf32>
    %34 = tpu.matmul %29, %31, %cst_43 {dimension_numbers = #tpu.dot_dimension_numbers<[1], [1], [0], [0], [0, 0, 1, 0], [], []>} : vector<3x8xf32>, vector<8x8xf32>, vector<3x8xf32> -> vector<3x8xf32>
    %cst_44 = arith.constant dense<0.000000e+00> : vector<3x8xf32>
    %35 = tpu.matmul %29, %33, %cst_44 {dimension_numbers = #tpu.dot_dimension_numbers<[1], [1], [0], [0], [0, 0, 1, 0], [], []>} : vector<3x8xf32>, vector<8x8xf32>, vector<3x8xf32> -> vector<3x8xf32>
    %c0_45 = arith.constant 0 : index
    %c1_46 = arith.constant 1 : index
    %c0_47 = arith.constant 0 : index
    %c0_48 = arith.constant 0 : index
    %c0_49 = arith.constant 0 : index
    %36 = vector.load %arg3[%c0_45, %c1_46, %c0_47, %c0_48, %c0_49] : memref<3x4x2x1x8xf32, #tpu.memory_space<vmem>>, vector<1x1x1x1x8xf32>
    %37 = vector.shape_cast %36 : vector<1x1x1x1x8xf32> to vector<1x8xf32>
    %38 = vector.broadcast %37 : vector<1x8xf32> to vector<3x8xf32>
    %39 = arith.mulf %34, %38 : vector<3x8xf32>
    %c0_50 = arith.constant 0 : index
    %c1_51 = arith.constant 1 : index
    %c0_52 = arith.constant 0 : index
    %c0_53 = arith.constant 0 : index
    %c0_54 = arith.constant 0 : index
    %40 = vector.load %arg4[%c0_50, %c1_51, %c0_52, %c0_53, %c0_54] : memref<3x4x2x1x8xf32, #tpu.memory_space<vmem>>, vector<1x1x1x1x8xf32>
    %41 = vector.shape_cast %40 : vector<1x1x1x1x8xf32> to vector<1x8xf32>
    %42 = vector.broadcast %41 : vector<1x8xf32> to vector<3x8xf32>
    %43 = arith.addf %39, %42 : vector<3x8xf32>
    %c0_55 = arith.constant 0 : index
    %c1_56 = arith.constant 1 : index
    %c1_57 = arith.constant 1 : index
    %c0_58 = arith.constant 0 : index
    %c0_59 = arith.constant 0 : index
    %44 = vector.load %arg3[%c0_55, %c1_56, %c1_57, %c0_58, %c0_59] : memref<3x4x2x1x8xf32, #tpu.memory_space<vmem>>, vector<1x1x1x1x8xf32>
    %45 = vector.shape_cast %44 : vector<1x1x1x1x8xf32> to vector<1x8xf32>
    %46 = vector.broadcast %45 : vector<1x8xf32> to vector<3x8xf32>
    %47 = arith.mulf %35, %46 : vector<3x8xf32>
    %c0_60 = arith.constant 0 : index
    %c1_61 = arith.constant 1 : index
    %c1_62 = arith.constant 1 : index
    %c0_63 = arith.constant 0 : index
    %c0_64 = arith.constant 0 : index
    %48 = vector.load %arg4[%c0_60, %c1_61, %c1_62, %c0_63, %c0_64] : memref<3x4x2x1x8xf32, #tpu.memory_space<vmem>>, vector<1x1x1x1x8xf32>
    %49 = vector.shape_cast %48 : vector<1x1x1x1x8xf32> to vector<1x8xf32>
    %50 = vector.broadcast %49 : vector<1x8xf32> to vector<3x8xf32>
    %51 = arith.addf %47, %50 : vector<3x8xf32>
    %52 = arith.negf %51 : vector<3x8xf32>
    %53 = math.exp %52 : vector<3x8xf32>
    %cst_65 = arith.constant 1.000000e+00 : f32
    %54 = vector.broadcast %cst_65 : f32 to vector<3x8xf32>
    %55 = arith.addf %54, %53 : vector<3x8xf32>
    %56 = arith.divf %54, %55 : vector<3x8xf32>
    %57 = arith.mulf %43, %56 : vector<3x8xf32>
    %58 = arith.addf %29, %57 : vector<3x8xf32>
    %cst_66 = arith.constant 0.707106769 : f32
    %59 = vector.broadcast %cst_66 : f32 to vector<3x8xf32>
    %60 = arith.mulf %58, %59 : vector<3x8xf32>
    %c0_67 = arith.constant 0 : index
    %c2 = arith.constant 2 : index
    %c0_68 = arith.constant 0 : index
    %c0_69 = arith.constant 0 : index
    %c0_70 = arith.constant 0 : index
    %61 = vector.load %arg2[%c0_67, %c2, %c0_68, %c0_69, %c0_70] : memref<3x4x2x8x8xf32, #tpu.memory_space<vmem>>, vector<1x1x1x8x8xf32>
    %62 = vector.shape_cast %61 : vector<1x1x1x8x8xf32> to vector<8x8xf32>
    %c0_71 = arith.constant 0 : index
    %c2_72 = arith.constant 2 : index
    %c1_73 = arith.constant 1 : index
    %c0_74 = arith.constant 0 : index
    %c0_75 = arith.constant 0 : index
    %63 = vector.load %arg2[%c0_71, %c2_72, %c1_73, %c0_74, %c0_75] : memref<3x4x2x8x8xf32, #tpu.memory_space<vmem>>, vector<1x1x1x8x8xf32>
    %64 = vector.shape_cast %63 : vector<1x1x1x8x8xf32> to vector<8x8xf32>
    %cst_76 = arith.constant dense<0.000000e+00> : vector<3x8xf32>
    %65 = tpu.matmul %60, %62, %cst_76 {dimension_numbers = #tpu.dot_dimension_numbers<[1], [1], [0], [0], [0, 0, 1, 0], [], []>} : vector<3x8xf32>, vector<8x8xf32>, vector<3x8xf32> -> vector<3x8xf32>
    %cst_77 = arith.constant dense<0.000000e+00> : vector<3x8xf32>
    %66 = tpu.matmul %60, %64, %cst_77 {dimension_numbers = #tpu.dot_dimension_numbers<[1], [1], [0], [0], [0, 0, 1, 0], [], []>} : vector<3x8xf32>, vector<8x8xf32>, vector<3x8xf32> -> vector<3x8xf32>
    %c0_78 = arith.constant 0 : index
    %c2_79 = arith.constant 2 : index
    %c0_80 = arith.constant 0 : index
    %c0_81 = arith.constant 0 : index
    %c0_82 = arith.constant 0 : index
    %67 = vector.load %arg3[%c0_78, %c2_79, %c0_80, %c0_81, %c0_82] : memref<3x4x2x1x8xf32, #tpu.memory_space<vmem>>, vector<1x1x1x1x8xf32>
    %68 = vector.shape_cast %67 : vector<1x1x1x1x8xf32> to vector<1x8xf32>
    %69 = vector.broadcast %68 : vector<1x8xf32> to vector<3x8xf32>
    %70 = arith.mulf %65, %69 : vector<3x8xf32>
    %c0_83 = arith.constant 0 : index
    %c2_84 = arith.constant 2 : index
    %c0_85 = arith.constant 0 : index
    %c0_86 = arith.constant 0 : index
    %c0_87 = arith.constant 0 : index
    %71 = vector.load %arg4[%c0_83, %c2_84, %c0_85, %c0_86, %c0_87] : memref<3x4x2x1x8xf32, #tpu.memory_space<vmem>>, vector<1x1x1x1x8xf32>
    %72 = vector.shape_cast %71 : vector<1x1x1x1x8xf32> to vector<1x8xf32>
    %73 = vector.broadcast %72 : vector<1x8xf32> to vector<3x8xf32>
    %74 = arith.addf %70, %73 : vector<3x8xf32>
    %c0_88 = arith.constant 0 : index
    %c2_89 = arith.constant 2 : index
    %c1_90 = arith.constant 1 : index
    %c0_91 = arith.constant 0 : index
    %c0_92 = arith.constant 0 : index
    %75 = vector.load %arg3[%c0_88, %c2_89, %c1_90, %c0_91, %c0_92] : memref<3x4x2x1x8xf32, #tpu.memory_space<vmem>>, vector<1x1x1x1x8xf32>
    %76 = vector.shape_cast %75 : vector<1x1x1x1x8xf32> to vector<1x8xf32>
    %77 = vector.broadcast %76 : vector<1x8xf32> to vector<3x8xf32>
    %78 = arith.mulf %66, %77 : vector<3x8xf32>
    %c0_93 = arith.constant 0 : index
    %c2_94 = arith.constant 2 : index
    %c1_95 = arith.constant 1 : index
    %c0_96 = arith.constant 0 : index
    %c0_97 = arith.constant 0 : index
    %79 = vector.load %arg4[%c0_93, %c2_94, %c1_95, %c0_96, %c0_97] : memref<3x4x2x1x8xf32, #tpu.memory_space<vmem>>, vector<1x1x1x1x8xf32>
    %80 = vector.shape_cast %79 : vector<1x1x1x1x8xf32> to vector<1x8xf32>
    %81 = vector.broadcast %80 : vector<1x8xf32> to vector<3x8xf32>
    %82 = arith.addf %78, %81 : vector<3x8xf32>
    %83 = arith.negf %82 : vector<3x8xf32>
    %84 = math.exp %83 : vector<3x8xf32>
    %cst_98 = arith.constant 1.000000e+00 : f32
    %85 = vector.broadcast %cst_98 : f32 to vector<3x8xf32>
    %86 = arith.addf %85, %84 : vector<3x8xf32>
    %87 = arith.divf %85, %86 : vector<3x8xf32>
    %88 = arith.mulf %74, %87 : vector<3x8xf32>
    %89 = arith.addf %60, %88 : vector<3x8xf32>
    %cst_99 = arith.constant 0.707106769 : f32
    %90 = vector.broadcast %cst_99 : f32 to vector<3x8xf32>
    %91 = arith.mulf %89, %90 : vector<3x8xf32>
    %c0_100 = arith.constant 0 : index
    %c3 = arith.constant 3 : index
    %c0_101 = arith.constant 0 : index
    %c0_102 = arith.constant 0 : index
    %c0_103 = arith.constant 0 : index
    %92 = vector.load %arg2[%c0_100, %c3, %c0_101, %c0_102, %c0_103] : memref<3x4x2x8x8xf32, #tpu.memory_space<vmem>>, vector<1x1x1x8x8xf32>
    %93 = vector.shape_cast %92 : vector<1x1x1x8x8xf32> to vector<8x8xf32>
    %c0_104 = arith.constant 0 : index
    %c3_105 = arith.constant 3 : index
    %c1_106 = arith.constant 1 : index
    %c0_107 = arith.constant 0 : index
    %c0_108 = arith.constant 0 : index
    %94 = vector.load %arg2[%c0_104, %c3_105, %c1_106, %c0_107, %c0_108] : memref<3x4x2x8x8xf32, #tpu.memory_space<vmem>>, vector<1x1x1x8x8xf32>
    %95 = vector.shape_cast %94 : vector<1x1x1x8x8xf32> to vector<8x8xf32>
    %cst_109 = arith.constant dense<0.000000e+00> : vector<3x8xf32>
    %96 = tpu.matmul %91, %93, %cst_109 {dimension_numbers = #tpu.dot_dimension_numbers<[1], [1], [0], [0], [0, 0, 1, 0], [], []>} : vector<3x8xf32>, vector<8x8xf32>, vector<3x8xf32> -> vector<3x8xf32>
    %cst_110 = arith.constant dense<0.000000e+00> : vector<3x8xf32>
    %97 = tpu.matmul %91, %95, %cst_110 {dimension_numbers = #tpu.dot_dimension_numbers<[1], [1], [0], [0], [0, 0, 1, 0], [], []>} : vector<3x8xf32>, vector<8x8xf32>, vector<3x8xf32> -> vector<3x8xf32>
    %c0_111 = arith.constant 0 : index
    %c3_112 = arith.constant 3 : index
    %c0_113 = arith.constant 0 : index
    %c0_114 = arith.constant 0 : index
    %c0_115 = arith.constant 0 : index
    %98 = vector.load %arg3[%c0_111, %c3_112, %c0_113, %c0_114, %c0_115] : memref<3x4x2x1x8xf32, #tpu.memory_space<vmem>>, vector<1x1x1x1x8xf32>
    %99 = vector.shape_cast %98 : vector<1x1x1x1x8xf32> to vector<1x8xf32>
    %100 = vector.broadcast %99 : vector<1x8xf32> to vector<3x8xf32>
    %101 = arith.mulf %96, %100 : vector<3x8xf32>
    %c0_116 = arith.constant 0 : index
    %c3_117 = arith.constant 3 : index
    %c0_118 = arith.constant 0 : index
    %c0_119 = arith.constant 0 : index
    %c0_120 = arith.constant 0 : index
    %102 = vector.load %arg4[%c0_116, %c3_117, %c0_118, %c0_119, %c0_120] : memref<3x4x2x1x8xf32, #tpu.memory_space<vmem>>, vector<1x1x1x1x8xf32>
    %103 = vector.shape_cast %102 : vector<1x1x1x1x8xf32> to vector<1x8xf32>
    %104 = vector.broadcast %103 : vector<1x8xf32> to vector<3x8xf32>
    %105 = arith.addf %101, %104 : vector<3x8xf32>
    %c0_121 = arith.constant 0 : index
    %c3_122 = arith.constant 3 : index
    %c1_123 = arith.constant 1 : index
    %c0_124 = arith.constant 0 : index
    %c0_125 = arith.constant 0 : index
    %106 = vector.load %arg3[%c0_121, %c3_122, %c1_123, %c0_124, %c0_125] : memref<3x4x2x1x8xf32, #tpu.memory_space<vmem>>, vector<1x1x1x1x8xf32>
    %107 = vector.shape_cast %106 : vector<1x1x1x1x8xf32> to vector<1x8xf32>
    %108 = vector.broadcast %107 : vector<1x8xf32> to vector<3x8xf32>
    %109 = arith.mulf %97, %108 : vector<3x8xf32>
    %c0_126 = arith.constant 0 : index
    %c3_127 = arith.constant 3 : index
    %c1_128 = arith.constant 1 : index
    %c0_129 = arith.constant 0 : index
    %c0_130 = arith.constant 0 : index
    %110 = vector.load %arg4[%c0_126, %c3_127, %c1_128, %c0_129, %c0_130] : memref<3x4x2x1x8xf32, #tpu.memory_space<vmem>>, vector<1x1x1x1x8xf32>
    %111 = vector.shape_cast %110 : vector<1x1x1x1x8xf32> to vector<1x8xf32>
    %112 = vector.broadcast %111 : vector<1x8xf32> to vector<3x8xf32>
    %113 = arith.addf %109, %112 : vector<3x8xf32>
    %114 = arith.negf %113 : vector<3x8xf32>
    %115 = math.exp %114 : vector<3x8xf32>
    %cst_131 = arith.constant 1.000000e+00 : f32
    %116 = vector.broadcast %cst_131 : f32 to vector<3x8xf32>
    %117 = arith.addf %116, %115 : vector<3x8xf32>
    %118 = arith.divf %116, %117 : vector<3x8xf32>
    %119 = arith.mulf %105, %118 : vector<3x8xf32>
    %120 = arith.addf %91, %119 : vector<3x8xf32>
    %cst_132 = arith.constant 0.707106769 : f32
    %121 = vector.broadcast %cst_132 : f32 to vector<3x8xf32>
    %122 = arith.mulf %120, %121 : vector<3x8xf32>
    %c1_133 = arith.constant 1 : index
    %c0_134 = arith.constant 0 : index
    %c0_135 = arith.constant 0 : index
    %123 = vector.load %arg1[%c1_133, %c0_134, %c0_135] : memref<3x3x8xf32, #tpu.memory_space<vmem>>, vector<1x3x8xf32>
    %124 = vector.shape_cast %123 : vector<1x3x8xf32> to vector<3x8xf32>
    %c1_136 = arith.constant 1 : index
    %c0_137 = arith.constant 0 : index
    %c0_138 = arith.constant 0 : index
    %c0_139 = arith.constant 0 : index
    %c0_140 = arith.constant 0 : index
    %125 = vector.load %arg2[%c1_136, %c0_137, %c0_138, %c0_139, %c0_140] : memref<3x4x2x8x8xf32, #tpu.memory_space<vmem>>, vector<1x1x1x8x8xf32>
    %126 = vector.shape_cast %125 : vector<1x1x1x8x8xf32> to vector<8x8xf32>
    %c1_141 = arith.constant 1 : index
    %c0_142 = arith.constant 0 : index
    %c1_143 = arith.constant 1 : index
    %c0_144 = arith.constant 0 : index
    %c0_145 = arith.constant 0 : index
    %127 = vector.load %arg2[%c1_141, %c0_142, %c1_143, %c0_144, %c0_145] : memref<3x4x2x8x8xf32, #tpu.memory_space<vmem>>, vector<1x1x1x8x8xf32>
    %128 = vector.shape_cast %127 : vector<1x1x1x8x8xf32> to vector<8x8xf32>
    %cst_146 = arith.constant dense<0.000000e+00> : vector<3x8xf32>
    %129 = tpu.matmul %124, %126, %cst_146 {dimension_numbers = #tpu.dot_dimension_numbers<[1], [1], [0], [0], [0, 0, 1, 0], [], []>} : vector<3x8xf32>, vector<8x8xf32>, vector<3x8xf32> -> vector<3x8xf32>
    %cst_147 = arith.constant dense<0.000000e+00> : vector<3x8xf32>
    %130 = tpu.matmul %124, %128, %cst_147 {dimension_numbers = #tpu.dot_dimension_numbers<[1], [1], [0], [0], [0, 0, 1, 0], [], []>} : vector<3x8xf32>, vector<8x8xf32>, vector<3x8xf32> -> vector<3x8xf32>
    %c1_148 = arith.constant 1 : index
    %c0_149 = arith.constant 0 : index
    %c0_150 = arith.constant 0 : index
    %c0_151 = arith.constant 0 : index
    %c0_152 = arith.constant 0 : index
    %131 = vector.load %arg3[%c1_148, %c0_149, %c0_150, %c0_151, %c0_152] : memref<3x4x2x1x8xf32, #tpu.memory_space<vmem>>, vector<1x1x1x1x8xf32>
    %132 = vector.shape_cast %131 : vector<1x1x1x1x8xf32> to vector<1x8xf32>
    %133 = vector.broadcast %132 : vector<1x8xf32> to vector<3x8xf32>
    %134 = arith.mulf %129, %133 : vector<3x8xf32>
    %c1_153 = arith.constant 1 : index
    %c0_154 = arith.constant 0 : index
    %c0_155 = arith.constant 0 : index
    %c0_156 = arith.constant 0 : index
    %c0_157 = arith.constant 0 : index
    %135 = vector.load %arg4[%c1_153, %c0_154, %c0_155, %c0_156, %c0_157] : memref<3x4x2x1x8xf32, #tpu.memory_space<vmem>>, vector<1x1x1x1x8xf32>
    %136 = vector.shape_cast %135 : vector<1x1x1x1x8xf32> to vector<1x8xf32>
    %137 = vector.broadcast %136 : vector<1x8xf32> to vector<3x8xf32>
    %138 = arith.addf %134, %137 : vector<3x8xf32>
    %c1_158 = arith.constant 1 : index
    %c0_159 = arith.constant 0 : index
    %c1_160 = arith.constant 1 : index
    %c0_161 = arith.constant 0 : index
    %c0_162 = arith.constant 0 : index
    %139 = vector.load %arg3[%c1_158, %c0_159, %c1_160, %c0_161, %c0_162] : memref<3x4x2x1x8xf32, #tpu.memory_space<vmem>>, vector<1x1x1x1x8xf32>
    %140 = vector.shape_cast %139 : vector<1x1x1x1x8xf32> to vector<1x8xf32>
    %141 = vector.broadcast %140 : vector<1x8xf32> to vector<3x8xf32>
    %142 = arith.mulf %130, %141 : vector<3x8xf32>
    %c1_163 = arith.constant 1 : index
    %c0_164 = arith.constant 0 : index
    %c1_165 = arith.constant 1 : index
    %c0_166 = arith.constant 0 : index
    %c0_167 = arith.constant 0 : index
    %143 = vector.load %arg4[%c1_163, %c0_164, %c1_165, %c0_166, %c0_167] : memref<3x4x2x1x8xf32, #tpu.memory_space<vmem>>, vector<1x1x1x1x8xf32>
    %144 = vector.shape_cast %143 : vector<1x1x1x1x8xf32> to vector<1x8xf32>
    %145 = vector.broadcast %144 : vector<1x8xf32> to vector<3x8xf32>
    %146 = arith.addf %142, %145 : vector<3x8xf32>
    %147 = arith.negf %146 : vector<3x8xf32>
    %148 = math.exp %147 : vector<3x8xf32>
    %cst_168 = arith.constant 1.000000e+00 : f32
    %149 = vector.broadcast %cst_168 : f32 to vector<3x8xf32>
    %150 = arith.addf %149, %148 : vector<3x8xf32>
    %151 = arith.divf %149, %150 : vector<3x8xf32>
    %152 = arith.mulf %138, %151 : vector<3x8xf32>
    %c1_169 = arith.constant 1 : index
    %c1_170 = arith.constant 1 : index
    %c0_171 = arith.constant 0 : index
    %c0_172 = arith.constant 0 : index
    %c0_173 = arith.constant 0 : index
    %153 = vector.load %arg2[%c1_169, %c1_170, %c0_171, %c0_172, %c0_173] : memref<3x4x2x8x8xf32, #tpu.memory_space<vmem>>, vector<1x1x1x8x8xf32>
    %154 = vector.shape_cast %153 : vector<1x1x1x8x8xf32> to vector<8x8xf32>
    %c1_174 = arith.constant 1 : index
    %c1_175 = arith.constant 1 : index
    %c1_176 = arith.constant 1 : index
    %c0_177 = arith.constant 0 : index
    %c0_178 = arith.constant 0 : index
    %155 = vector.load %arg2[%c1_174, %c1_175, %c1_176, %c0_177, %c0_178] : memref<3x4x2x8x8xf32, #tpu.memory_space<vmem>>, vector<1x1x1x8x8xf32>
    %156 = vector.shape_cast %155 : vector<1x1x1x8x8xf32> to vector<8x8xf32>
    %cst_179 = arith.constant dense<0.000000e+00> : vector<3x8xf32>
    %157 = tpu.matmul %152, %154, %cst_179 {dimension_numbers = #tpu.dot_dimension_numbers<[1], [1], [0], [0], [0, 0, 1, 0], [], []>} : vector<3x8xf32>, vector<8x8xf32>, vector<3x8xf32> -> vector<3x8xf32>
    %cst_180 = arith.constant dense<0.000000e+00> : vector<3x8xf32>
    %158 = tpu.matmul %152, %156, %cst_180 {dimension_numbers = #tpu.dot_dimension_numbers<[1], [1], [0], [0], [0, 0, 1, 0], [], []>} : vector<3x8xf32>, vector<8x8xf32>, vector<3x8xf32> -> vector<3x8xf32>
    %c1_181 = arith.constant 1 : index
    %c1_182 = arith.constant 1 : index
    %c0_183 = arith.constant 0 : index
    %c0_184 = arith.constant 0 : index
    %c0_185 = arith.constant 0 : index
    %159 = vector.load %arg3[%c1_181, %c1_182, %c0_183, %c0_184, %c0_185] : memref<3x4x2x1x8xf32, #tpu.memory_space<vmem>>, vector<1x1x1x1x8xf32>
    %160 = vector.shape_cast %159 : vector<1x1x1x1x8xf32> to vector<1x8xf32>
    %161 = vector.broadcast %160 : vector<1x8xf32> to vector<3x8xf32>
    %162 = arith.mulf %157, %161 : vector<3x8xf32>
    %c1_186 = arith.constant 1 : index
    %c1_187 = arith.constant 1 : index
    %c0_188 = arith.constant 0 : index
    %c0_189 = arith.constant 0 : index
    %c0_190 = arith.constant 0 : index
    %163 = vector.load %arg4[%c1_186, %c1_187, %c0_188, %c0_189, %c0_190] : memref<3x4x2x1x8xf32, #tpu.memory_space<vmem>>, vector<1x1x1x1x8xf32>
    %164 = vector.shape_cast %163 : vector<1x1x1x1x8xf32> to vector<1x8xf32>
    %165 = vector.broadcast %164 : vector<1x8xf32> to vector<3x8xf32>
    %166 = arith.addf %162, %165 : vector<3x8xf32>
    %c1_191 = arith.constant 1 : index
    %c1_192 = arith.constant 1 : index
    %c1_193 = arith.constant 1 : index
    %c0_194 = arith.constant 0 : index
    %c0_195 = arith.constant 0 : index
    %167 = vector.load %arg3[%c1_191, %c1_192, %c1_193, %c0_194, %c0_195] : memref<3x4x2x1x8xf32, #tpu.memory_space<vmem>>, vector<1x1x1x1x8xf32>
    %168 = vector.shape_cast %167 : vector<1x1x1x1x8xf32> to vector<1x8xf32>
    %169 = vector.broadcast %168 : vector<1x8xf32> to vector<3x8xf32>
    %170 = arith.mulf %158, %169 : vector<3x8xf32>
    %c1_196 = arith.constant 1 : index
    %c1_197 = arith.constant 1 : index
    %c1_198 = arith.constant 1 : index
    %c0_199 = arith.constant 0 : index
    %c0_200 = arith.constant 0 : index
    %171 = vector.load %arg4[%c1_196, %c1_197, %c1_198, %c0_199, %c0_200] : memref<3x4x2x1x8xf32, #tpu.memory_space<vmem>>, vector<1x1x1x1x8xf32>
    %172 = vector.shape_cast %171 : vector<1x1x1x1x8xf32> to vector<1x8xf32>
    %173 = vector.broadcast %172 : vector<1x8xf32> to vector<3x8xf32>
    %174 = arith.addf %170, %173 : vector<3x8xf32>
    %175 = arith.negf %174 : vector<3x8xf32>
    %176 = math.exp %175 : vector<3x8xf32>
    %cst_201 = arith.constant 1.000000e+00 : f32
    %177 = vector.broadcast %cst_201 : f32 to vector<3x8xf32>
    %178 = arith.addf %177, %176 : vector<3x8xf32>
    %179 = arith.divf %177, %178 : vector<3x8xf32>
    %180 = arith.mulf %166, %179 : vector<3x8xf32>
    %181 = arith.addf %152, %180 : vector<3x8xf32>
    %cst_202 = arith.constant 0.707106769 : f32
    %182 = vector.broadcast %cst_202 : f32 to vector<3x8xf32>
    %183 = arith.mulf %181, %182 : vector<3x8xf32>
    %c1_203 = arith.constant 1 : index
    %c2_204 = arith.constant 2 : index
    %c0_205 = arith.constant 0 : index
    %c0_206 = arith.constant 0 : index
    %c0_207 = arith.constant 0 : index
    %184 = vector.load %arg2[%c1_203, %c2_204, %c0_205, %c0_206, %c0_207] : memref<3x4x2x8x8xf32, #tpu.memory_space<vmem>>, vector<1x1x1x8x8xf32>
    %185 = vector.shape_cast %184 : vector<1x1x1x8x8xf32> to vector<8x8xf32>
    %c1_208 = arith.constant 1 : index
    %c2_209 = arith.constant 2 : index
    %c1_210 = arith.constant 1 : index
    %c0_211 = arith.constant 0 : index
    %c0_212 = arith.constant 0 : index
    %186 = vector.load %arg2[%c1_208, %c2_209, %c1_210, %c0_211, %c0_212] : memref<3x4x2x8x8xf32, #tpu.memory_space<vmem>>, vector<1x1x1x8x8xf32>
    %187 = vector.shape_cast %186 : vector<1x1x1x8x8xf32> to vector<8x8xf32>
    %cst_213 = arith.constant dense<0.000000e+00> : vector<3x8xf32>
    %188 = tpu.matmul %183, %185, %cst_213 {dimension_numbers = #tpu.dot_dimension_numbers<[1], [1], [0], [0], [0, 0, 1, 0], [], []>} : vector<3x8xf32>, vector<8x8xf32>, vector<3x8xf32> -> vector<3x8xf32>
    %cst_214 = arith.constant dense<0.000000e+00> : vector<3x8xf32>
    %189 = tpu.matmul %183, %187, %cst_214 {dimension_numbers = #tpu.dot_dimension_numbers<[1], [1], [0], [0], [0, 0, 1, 0], [], []>} : vector<3x8xf32>, vector<8x8xf32>, vector<3x8xf32> -> vector<3x8xf32>
    %c1_215 = arith.constant 1 : index
    %c2_216 = arith.constant 2 : index
    %c0_217 = arith.constant 0 : index
    %c0_218 = arith.constant 0 : index
    %c0_219 = arith.constant 0 : index
    %190 = vector.load %arg3[%c1_215, %c2_216, %c0_217, %c0_218, %c0_219] : memref<3x4x2x1x8xf32, #tpu.memory_space<vmem>>, vector<1x1x1x1x8xf32>
    %191 = vector.shape_cast %190 : vector<1x1x1x1x8xf32> to vector<1x8xf32>
    %192 = vector.broadcast %191 : vector<1x8xf32> to vector<3x8xf32>
    %193 = arith.mulf %188, %192 : vector<3x8xf32>
    %c1_220 = arith.constant 1 : index
    %c2_221 = arith.constant 2 : index
    %c0_222 = arith.constant 0 : index
    %c0_223 = arith.constant 0 : index
    %c0_224 = arith.constant 0 : index
    %194 = vector.load %arg4[%c1_220, %c2_221, %c0_222, %c0_223, %c0_224] : memref<3x4x2x1x8xf32, #tpu.memory_space<vmem>>, vector<1x1x1x1x8xf32>
    %195 = vector.shape_cast %194 : vector<1x1x1x1x8xf32> to vector<1x8xf32>
    %196 = vector.broadcast %195 : vector<1x8xf32> to vector<3x8xf32>
    %197 = arith.addf %193, %196 : vector<3x8xf32>
    %c1_225 = arith.constant 1 : index
    %c2_226 = arith.constant 2 : index
    %c1_227 = arith.constant 1 : index
    %c0_228 = arith.constant 0 : index
    %c0_229 = arith.constant 0 : index
    %198 = vector.load %arg3[%c1_225, %c2_226, %c1_227, %c0_228, %c0_229] : memref<3x4x2x1x8xf32, #tpu.memory_space<vmem>>, vector<1x1x1x1x8xf32>
    %199 = vector.shape_cast %198 : vector<1x1x1x1x8xf32> to vector<1x8xf32>
    %200 = vector.broadcast %199 : vector<1x8xf32> to vector<3x8xf32>
    %201 = arith.mulf %189, %200 : vector<3x8xf32>
    %c1_230 = arith.constant 1 : index
    %c2_231 = arith.constant 2 : index
    %c1_232 = arith.constant 1 : index
    %c0_233 = arith.constant 0 : index
    %c0_234 = arith.constant 0 : index
    %202 = vector.load %arg4[%c1_230, %c2_231, %c1_232, %c0_233, %c0_234] : memref<3x4x2x1x8xf32, #tpu.memory_space<vmem>>, vector<1x1x1x1x8xf32>
    %203 = vector.shape_cast %202 : vector<1x1x1x1x8xf32> to vector<1x8xf32>
    %204 = vector.broadcast %203 : vector<1x8xf32> to vector<3x8xf32>
    %205 = arith.addf %201, %204 : vector<3x8xf32>
    %206 = arith.negf %205 : vector<3x8xf32>
    %207 = math.exp %206 : vector<3x8xf32>
    %cst_235 = arith.constant 1.000000e+00 : f32
    %208 = vector.broadcast %cst_235 : f32 to vector<3x8xf32>
    %209 = arith.addf %208, %207 : vector<3x8xf32>
    %210 = arith.divf %208, %209 : vector<3x8xf32>
    %211 = arith.mulf %197, %210 : vector<3x8xf32>
    %212 = arith.addf %183, %211 : vector<3x8xf32>
    %cst_236 = arith.constant 0.707106769 : f32
    %213 = vector.broadcast %cst_236 : f32 to vector<3x8xf32>
    %214 = arith.mulf %212, %213 : vector<3x8xf32>
    %c1_237 = arith.constant 1 : index
    %c3_238 = arith.constant 3 : index
    %c0_239 = arith.constant 0 : index
    %c0_240 = arith.constant 0 : index
    %c0_241 = arith.constant 0 : index
    %215 = vector.load %arg2[%c1_237, %c3_238, %c0_239, %c0_240, %c0_241] : memref<3x4x2x8x8xf32, #tpu.memory_space<vmem>>, vector<1x1x1x8x8xf32>
    %216 = vector.shape_cast %215 : vector<1x1x1x8x8xf32> to vector<8x8xf32>
    %c1_242 = arith.constant 1 : index
    %c3_243 = arith.constant 3 : index
    %c1_244 = arith.constant 1 : index
    %c0_245 = arith.constant 0 : index
    %c0_246 = arith.constant 0 : index
    %217 = vector.load %arg2[%c1_242, %c3_243, %c1_244, %c0_245, %c0_246] : memref<3x4x2x8x8xf32, #tpu.memory_space<vmem>>, vector<1x1x1x8x8xf32>
    %218 = vector.shape_cast %217 : vector<1x1x1x8x8xf32> to vector<8x8xf32>
    %cst_247 = arith.constant dense<0.000000e+00> : vector<3x8xf32>
    %219 = tpu.matmul %214, %216, %cst_247 {dimension_numbers = #tpu.dot_dimension_numbers<[1], [1], [0], [0], [0, 0, 1, 0], [], []>} : vector<3x8xf32>, vector<8x8xf32>, vector<3x8xf32> -> vector<3x8xf32>
    %cst_248 = arith.constant dense<0.000000e+00> : vector<3x8xf32>
    %220 = tpu.matmul %214, %218, %cst_248 {dimension_numbers = #tpu.dot_dimension_numbers<[1], [1], [0], [0], [0, 0, 1, 0], [], []>} : vector<3x8xf32>, vector<8x8xf32>, vector<3x8xf32> -> vector<3x8xf32>
    %c1_249 = arith.constant 1 : index
    %c3_250 = arith.constant 3 : index
    %c0_251 = arith.constant 0 : index
    %c0_252 = arith.constant 0 : index
    %c0_253 = arith.constant 0 : index
    %221 = vector.load %arg3[%c1_249, %c3_250, %c0_251, %c0_252, %c0_253] : memref<3x4x2x1x8xf32, #tpu.memory_space<vmem>>, vector<1x1x1x1x8xf32>
    %222 = vector.shape_cast %221 : vector<1x1x1x1x8xf32> to vector<1x8xf32>
    %223 = vector.broadcast %222 : vector<1x8xf32> to vector<3x8xf32>
    %224 = arith.mulf %219, %223 : vector<3x8xf32>
    %c1_254 = arith.constant 1 : index
    %c3_255 = arith.constant 3 : index
    %c0_256 = arith.constant 0 : index
    %c0_257 = arith.constant 0 : index
    %c0_258 = arith.constant 0 : index
    %225 = vector.load %arg4[%c1_254, %c3_255, %c0_256, %c0_257, %c0_258] : memref<3x4x2x1x8xf32, #tpu.memory_space<vmem>>, vector<1x1x1x1x8xf32>
    %226 = vector.shape_cast %225 : vector<1x1x1x1x8xf32> to vector<1x8xf32>
    %227 = vector.broadcast %226 : vector<1x8xf32> to vector<3x8xf32>
    %228 = arith.addf %224, %227 : vector<3x8xf32>
    %c1_259 = arith.constant 1 : index
    %c3_260 = arith.constant 3 : index
    %c1_261 = arith.constant 1 : index
    %c0_262 = arith.constant 0 : index
    %c0_263 = arith.constant 0 : index
    %229 = vector.load %arg3[%c1_259, %c3_260, %c1_261, %c0_262, %c0_263] : memref<3x4x2x1x8xf32, #tpu.memory_space<vmem>>, vector<1x1x1x1x8xf32>
    %230 = vector.shape_cast %229 : vector<1x1x1x1x8xf32> to vector<1x8xf32>
    %231 = vector.broadcast %230 : vector<1x8xf32> to vector<3x8xf32>
    %232 = arith.mulf %220, %231 : vector<3x8xf32>
    %c1_264 = arith.constant 1 : index
    %c3_265 = arith.constant 3 : index
    %c1_266 = arith.constant 1 : index
    %c0_267 = arith.constant 0 : index
    %c0_268 = arith.constant 0 : index
    %233 = vector.load %arg4[%c1_264, %c3_265, %c1_266, %c0_267, %c0_268] : memref<3x4x2x1x8xf32, #tpu.memory_space<vmem>>, vector<1x1x1x1x8xf32>
    %234 = vector.shape_cast %233 : vector<1x1x1x1x8xf32> to vector<1x8xf32>
    %235 = vector.broadcast %234 : vector<1x8xf32> to vector<3x8xf32>
    %236 = arith.addf %232, %235 : vector<3x8xf32>
    %237 = arith.negf %236 : vector<3x8xf32>
    %238 = math.exp %237 : vector<3x8xf32>
    %cst_269 = arith.constant 1.000000e+00 : f32
    %239 = vector.broadcast %cst_269 : f32 to vector<3x8xf32>
    %240 = arith.addf %239, %238 : vector<3x8xf32>
    %241 = arith.divf %239, %240 : vector<3x8xf32>
    %242 = arith.mulf %228, %241 : vector<3x8xf32>
    %243 = arith.addf %214, %242 : vector<3x8xf32>
    %cst_270 = arith.constant 0.707106769 : f32
    %244 = vector.broadcast %cst_270 : f32 to vector<3x8xf32>
    %245 = arith.mulf %243, %244 : vector<3x8xf32>
    %246 = arith.addf %122, %245 : vector<3x8xf32>
    %c2_271 = arith.constant 2 : index
    %c0_272 = arith.constant 0 : index
    %c0_273 = arith.constant 0 : index
    %247 = vector.load %arg1[%c2_271, %c0_272, %c0_273] : memref<3x3x8xf32, #tpu.memory_space<vmem>>, vector<1x3x8xf32>
    %248 = vector.shape_cast %247 : vector<1x3x8xf32> to vector<3x8xf32>
    %c2_274 = arith.constant 2 : index
    %c0_275 = arith.constant 0 : index
    %c0_276 = arith.constant 0 : index
    %c0_277 = arith.constant 0 : index
    %c0_278 = arith.constant 0 : index
    %249 = vector.load %arg2[%c2_274, %c0_275, %c0_276, %c0_277, %c0_278] : memref<3x4x2x8x8xf32, #tpu.memory_space<vmem>>, vector<1x1x1x8x8xf32>
    %250 = vector.shape_cast %249 : vector<1x1x1x8x8xf32> to vector<8x8xf32>
    %c2_279 = arith.constant 2 : index
    %c0_280 = arith.constant 0 : index
    %c1_281 = arith.constant 1 : index
    %c0_282 = arith.constant 0 : index
    %c0_283 = arith.constant 0 : index
    %251 = vector.load %arg2[%c2_279, %c0_280, %c1_281, %c0_282, %c0_283] : memref<3x4x2x8x8xf32, #tpu.memory_space<vmem>>, vector<1x1x1x8x8xf32>
    %252 = vector.shape_cast %251 : vector<1x1x1x8x8xf32> to vector<8x8xf32>
    %cst_284 = arith.constant dense<0.000000e+00> : vector<3x8xf32>
    %253 = tpu.matmul %248, %250, %cst_284 {dimension_numbers = #tpu.dot_dimension_numbers<[1], [1], [0], [0], [0, 0, 1, 0], [], []>} : vector<3x8xf32>, vector<8x8xf32>, vector<3x8xf32> -> vector<3x8xf32>
    %cst_285 = arith.constant dense<0.000000e+00> : vector<3x8xf32>
    %254 = tpu.matmul %248, %252, %cst_285 {dimension_numbers = #tpu.dot_dimension_numbers<[1], [1], [0], [0], [0, 0, 1, 0], [], []>} : vector<3x8xf32>, vector<8x8xf32>, vector<3x8xf32> -> vector<3x8xf32>
    %c2_286 = arith.constant 2 : index
    %c0_287 = arith.constant 0 : index
    %c0_288 = arith.constant 0 : index
    %c0_289 = arith.constant 0 : index
    %c0_290 = arith.constant 0 : index
    %255 = vector.load %arg3[%c2_286, %c0_287, %c0_288, %c0_289, %c0_290] : memref<3x4x2x1x8xf32, #tpu.memory_space<vmem>>, vector<1x1x1x1x8xf32>
    %256 = vector.shape_cast %255 : vector<1x1x1x1x8xf32> to vector<1x8xf32>
    %257 = vector.broadcast %256 : vector<1x8xf32> to vector<3x8xf32>
    %258 = arith.mulf %253, %257 : vector<3x8xf32>
    %c2_291 = arith.constant 2 : index
    %c0_292 = arith.constant 0 : index
    %c0_293 = arith.constant 0 : index
    %c0_294 = arith.constant 0 : index
    %c0_295 = arith.constant 0 : index
    %259 = vector.load %arg4[%c2_291, %c0_292, %c0_293, %c0_294, %c0_295] : memref<3x4x2x1x8xf32, #tpu.memory_space<vmem>>, vector<1x1x1x1x8xf32>
    %260 = vector.shape_cast %259 : vector<1x1x1x1x8xf32> to vector<1x8xf32>
    %261 = vector.broadcast %260 : vector<1x8xf32> to vector<3x8xf32>
    %262 = arith.addf %258, %261 : vector<3x8xf32>
    %c2_296 = arith.constant 2 : index
    %c0_297 = arith.constant 0 : index
    %c1_298 = arith.constant 1 : index
    %c0_299 = arith.constant 0 : index
    %c0_300 = arith.constant 0 : index
    %263 = vector.load %arg3[%c2_296, %c0_297, %c1_298, %c0_299, %c0_300] : memref<3x4x2x1x8xf32, #tpu.memory_space<vmem>>, vector<1x1x1x1x8xf32>
    %264 = vector.shape_cast %263 : vector<1x1x1x1x8xf32> to vector<1x8xf32>
    %265 = vector.broadcast %264 : vector<1x8xf32> to vector<3x8xf32>
    %266 = arith.mulf %254, %265 : vector<3x8xf32>
    %c2_301 = arith.constant 2 : index
    %c0_302 = arith.constant 0 : index
    %c1_303 = arith.constant 1 : index
    %c0_304 = arith.constant 0 : index
    %c0_305 = arith.constant 0 : index
    %267 = vector.load %arg4[%c2_301, %c0_302, %c1_303, %c0_304, %c0_305] : memref<3x4x2x1x8xf32, #tpu.memory_space<vmem>>, vector<1x1x1x1x8xf32>
    %268 = vector.shape_cast %267 : vector<1x1x1x1x8xf32> to vector<1x8xf32>
    %269 = vector.broadcast %268 : vector<1x8xf32> to vector<3x8xf32>
    %270 = arith.addf %266, %269 : vector<3x8xf32>
    %271 = arith.negf %270 : vector<3x8xf32>
    %272 = math.exp %271 : vector<3x8xf32>
    %cst_306 = arith.constant 1.000000e+00 : f32
    %273 = vector.broadcast %cst_306 : f32 to vector<3x8xf32>
    %274 = arith.addf %273, %272 : vector<3x8xf32>
    %275 = arith.divf %273, %274 : vector<3x8xf32>
    %276 = arith.mulf %262, %275 : vector<3x8xf32>
    %c2_307 = arith.constant 2 : index
    %c1_308 = arith.constant 1 : index
    %c0_309 = arith.constant 0 : index
    %c0_310 = arith.constant 0 : index
    %c0_311 = arith.constant 0 : index
    %277 = vector.load %arg2[%c2_307, %c1_308, %c0_309, %c0_310, %c0_311] : memref<3x4x2x8x8xf32, #tpu.memory_space<vmem>>, vector<1x1x1x8x8xf32>
    %278 = vector.shape_cast %277 : vector<1x1x1x8x8xf32> to vector<8x8xf32>
    %c2_312 = arith.constant 2 : index
    %c1_313 = arith.constant 1 : index
    %c1_314 = arith.constant 1 : index
    %c0_315 = arith.constant 0 : index
    %c0_316 = arith.constant 0 : index
    %279 = vector.load %arg2[%c2_312, %c1_313, %c1_314, %c0_315, %c0_316] : memref<3x4x2x8x8xf32, #tpu.memory_space<vmem>>, vector<1x1x1x8x8xf32>
    %280 = vector.shape_cast %279 : vector<1x1x1x8x8xf32> to vector<8x8xf32>
    %cst_317 = arith.constant dense<0.000000e+00> : vector<3x8xf32>
    %281 = tpu.matmul %276, %278, %cst_317 {dimension_numbers = #tpu.dot_dimension_numbers<[1], [1], [0], [0], [0, 0, 1, 0], [], []>} : vector<3x8xf32>, vector<8x8xf32>, vector<3x8xf32> -> vector<3x8xf32>
    %cst_318 = arith.constant dense<0.000000e+00> : vector<3x8xf32>
    %282 = tpu.matmul %276, %280, %cst_318 {dimension_numbers = #tpu.dot_dimension_numbers<[1], [1], [0], [0], [0, 0, 1, 0], [], []>} : vector<3x8xf32>, vector<8x8xf32>, vector<3x8xf32> -> vector<3x8xf32>
    %c2_319 = arith.constant 2 : index
    %c1_320 = arith.constant 1 : index
    %c0_321 = arith.constant 0 : index
    %c0_322 = arith.constant 0 : index
    %c0_323 = arith.constant 0 : index
    %283 = vector.load %arg3[%c2_319, %c1_320, %c0_321, %c0_322, %c0_323] : memref<3x4x2x1x8xf32, #tpu.memory_space<vmem>>, vector<1x1x1x1x8xf32>
    %284 = vector.shape_cast %283 : vector<1x1x1x1x8xf32> to vector<1x8xf32>
    %285 = vector.broadcast %284 : vector<1x8xf32> to vector<3x8xf32>
    %286 = arith.mulf %281, %285 : vector<3x8xf32>
    %c2_324 = arith.constant 2 : index
    %c1_325 = arith.constant 1 : index
    %c0_326 = arith.constant 0 : index
    %c0_327 = arith.constant 0 : index
    %c0_328 = arith.constant 0 : index
    %287 = vector.load %arg4[%c2_324, %c1_325, %c0_326, %c0_327, %c0_328] : memref<3x4x2x1x8xf32, #tpu.memory_space<vmem>>, vector<1x1x1x1x8xf32>
    %288 = vector.shape_cast %287 : vector<1x1x1x1x8xf32> to vector<1x8xf32>
    %289 = vector.broadcast %288 : vector<1x8xf32> to vector<3x8xf32>
    %290 = arith.addf %286, %289 : vector<3x8xf32>
    %c2_329 = arith.constant 2 : index
    %c1_330 = arith.constant 1 : index
    %c1_331 = arith.constant 1 : index
    %c0_332 = arith.constant 0 : index
    %c0_333 = arith.constant 0 : index
    %291 = vector.load %arg3[%c2_329, %c1_330, %c1_331, %c0_332, %c0_333] : memref<3x4x2x1x8xf32, #tpu.memory_space<vmem>>, vector<1x1x1x1x8xf32>
    %292 = vector.shape_cast %291 : vector<1x1x1x1x8xf32> to vector<1x8xf32>
    %293 = vector.broadcast %292 : vector<1x8xf32> to vector<3x8xf32>
    %294 = arith.mulf %282, %293 : vector<3x8xf32>
    %c2_334 = arith.constant 2 : index
    %c1_335 = arith.constant 1 : index
    %c1_336 = arith.constant 1 : index
    %c0_337 = arith.constant 0 : index
    %c0_338 = arith.constant 0 : index
    %295 = vector.load %arg4[%c2_334, %c1_335, %c1_336, %c0_337, %c0_338] : memref<3x4x2x1x8xf32, #tpu.memory_space<vmem>>, vector<1x1x1x1x8xf32>
    %296 = vector.shape_cast %295 : vector<1x1x1x1x8xf32> to vector<1x8xf32>
    %297 = vector.broadcast %296 : vector<1x8xf32> to vector<3x8xf32>
    %298 = arith.addf %294, %297 : vector<3x8xf32>
    %299 = arith.negf %298 : vector<3x8xf32>
    %300 = math.exp %299 : vector<3x8xf32>
    %cst_339 = arith.constant 1.000000e+00 : f32
    %301 = vector.broadcast %cst_339 : f32 to vector<3x8xf32>
    %302 = arith.addf %301, %300 : vector<3x8xf32>
    %303 = arith.divf %301, %302 : vector<3x8xf32>
    %304 = arith.mulf %290, %303 : vector<3x8xf32>
    %305 = arith.addf %276, %304 : vector<3x8xf32>
    %cst_340 = arith.constant 0.707106769 : f32
    %306 = vector.broadcast %cst_340 : f32 to vector<3x8xf32>
    %307 = arith.mulf %305, %306 : vector<3x8xf32>
    %c2_341 = arith.constant 2 : index
    %c2_342 = arith.constant 2 : index
    %c0_343 = arith.constant 0 : index
    %c0_344 = arith.constant 0 : index
    %c0_345 = arith.constant 0 : index
    %308 = vector.load %arg2[%c2_341, %c2_342, %c0_343, %c0_344, %c0_345] : memref<3x4x2x8x8xf32, #tpu.memory_space<vmem>>, vector<1x1x1x8x8xf32>
    %309 = vector.shape_cast %308 : vector<1x1x1x8x8xf32> to vector<8x8xf32>
    %c2_346 = arith.constant 2 : index
    %c2_347 = arith.constant 2 : index
    %c1_348 = arith.constant 1 : index
    %c0_349 = arith.constant 0 : index
    %c0_350 = arith.constant 0 : index
    %310 = vector.load %arg2[%c2_346, %c2_347, %c1_348, %c0_349, %c0_350] : memref<3x4x2x8x8xf32, #tpu.memory_space<vmem>>, vector<1x1x1x8x8xf32>
    %311 = vector.shape_cast %310 : vector<1x1x1x8x8xf32> to vector<8x8xf32>
    %cst_351 = arith.constant dense<0.000000e+00> : vector<3x8xf32>
    %312 = tpu.matmul %307, %309, %cst_351 {dimension_numbers = #tpu.dot_dimension_numbers<[1], [1], [0], [0], [0, 0, 1, 0], [], []>} : vector<3x8xf32>, vector<8x8xf32>, vector<3x8xf32> -> vector<3x8xf32>
    %cst_352 = arith.constant dense<0.000000e+00> : vector<3x8xf32>
    %313 = tpu.matmul %307, %311, %cst_352 {dimension_numbers = #tpu.dot_dimension_numbers<[1], [1], [0], [0], [0, 0, 1, 0], [], []>} : vector<3x8xf32>, vector<8x8xf32>, vector<3x8xf32> -> vector<3x8xf32>
    %c2_353 = arith.constant 2 : index
    %c2_354 = arith.constant 2 : index
    %c0_355 = arith.constant 0 : index
    %c0_356 = arith.constant 0 : index
    %c0_357 = arith.constant 0 : index
    %314 = vector.load %arg3[%c2_353, %c2_354, %c0_355, %c0_356, %c0_357] : memref<3x4x2x1x8xf32, #tpu.memory_space<vmem>>, vector<1x1x1x1x8xf32>
    %315 = vector.shape_cast %314 : vector<1x1x1x1x8xf32> to vector<1x8xf32>
    %316 = vector.broadcast %315 : vector<1x8xf32> to vector<3x8xf32>
    %317 = arith.mulf %312, %316 : vector<3x8xf32>
    %c2_358 = arith.constant 2 : index
    %c2_359 = arith.constant 2 : index
    %c0_360 = arith.constant 0 : index
    %c0_361 = arith.constant 0 : index
    %c0_362 = arith.constant 0 : index
    %318 = vector.load %arg4[%c2_358, %c2_359, %c0_360, %c0_361, %c0_362] : memref<3x4x2x1x8xf32, #tpu.memory_space<vmem>>, vector<1x1x1x1x8xf32>
    %319 = vector.shape_cast %318 : vector<1x1x1x1x8xf32> to vector<1x8xf32>
    %320 = vector.broadcast %319 : vector<1x8xf32> to vector<3x8xf32>
    %321 = arith.addf %317, %320 : vector<3x8xf32>
    %c2_363 = arith.constant 2 : index
    %c2_364 = arith.constant 2 : index
    %c1_365 = arith.constant 1 : index
    %c0_366 = arith.constant 0 : index
    %c0_367 = arith.constant 0 : index
    %322 = vector.load %arg3[%c2_363, %c2_364, %c1_365, %c0_366, %c0_367] : memref<3x4x2x1x8xf32, #tpu.memory_space<vmem>>, vector<1x1x1x1x8xf32>
    %323 = vector.shape_cast %322 : vector<1x1x1x1x8xf32> to vector<1x8xf32>
    %324 = vector.broadcast %323 : vector<1x8xf32> to vector<3x8xf32>
    %325 = arith.mulf %313, %324 : vector<3x8xf32>
    %c2_368 = arith.constant 2 : index
    %c2_369 = arith.constant 2 : index
    %c1_370 = arith.constant 1 : index
    %c0_371 = arith.constant 0 : index
    %c0_372 = arith.constant 0 : index
    %326 = vector.load %arg4[%c2_368, %c2_369, %c1_370, %c0_371, %c0_372] : memref<3x4x2x1x8xf32, #tpu.memory_space<vmem>>, vector<1x1x1x1x8xf32>
    %327 = vector.shape_cast %326 : vector<1x1x1x1x8xf32> to vector<1x8xf32>
    %328 = vector.broadcast %327 : vector<1x8xf32> to vector<3x8xf32>
    %329 = arith.addf %325, %328 : vector<3x8xf32>
    %330 = arith.negf %329 : vector<3x8xf32>
    %331 = math.exp %330 : vector<3x8xf32>
    %cst_373 = arith.constant 1.000000e+00 : f32
    %332 = vector.broadcast %cst_373 : f32 to vector<3x8xf32>
    %333 = arith.addf %332, %331 : vector<3x8xf32>
    %334 = arith.divf %332, %333 : vector<3x8xf32>
    %335 = arith.mulf %321, %334 : vector<3x8xf32>
    %336 = arith.addf %307, %335 : vector<3x8xf32>
    %cst_374 = arith.constant 0.707106769 : f32
    %337 = vector.broadcast %cst_374 : f32 to vector<3x8xf32>
    %338 = arith.mulf %336, %337 : vector<3x8xf32>
    %c2_375 = arith.constant 2 : index
    %c3_376 = arith.constant 3 : index
    %c0_377 = arith.constant 0 : index
    %c0_378 = arith.constant 0 : index
    %c0_379 = arith.constant 0 : index
    %339 = vector.load %arg2[%c2_375, %c3_376, %c0_377, %c0_378, %c0_379] : memref<3x4x2x8x8xf32, #tpu.memory_space<vmem>>, vector<1x1x1x8x8xf32>
    %340 = vector.shape_cast %339 : vector<1x1x1x8x8xf32> to vector<8x8xf32>
    %c2_380 = arith.constant 2 : index
    %c3_381 = arith.constant 3 : index
    %c1_382 = arith.constant 1 : index
    %c0_383 = arith.constant 0 : index
    %c0_384 = arith.constant 0 : index
    %341 = vector.load %arg2[%c2_380, %c3_381, %c1_382, %c0_383, %c0_384] : memref<3x4x2x8x8xf32, #tpu.memory_space<vmem>>, vector<1x1x1x8x8xf32>
    %342 = vector.shape_cast %341 : vector<1x1x1x8x8xf32> to vector<8x8xf32>
    %cst_385 = arith.constant dense<0.000000e+00> : vector<3x8xf32>
    %343 = tpu.matmul %338, %340, %cst_385 {dimension_numbers = #tpu.dot_dimension_numbers<[1], [1], [0], [0], [0, 0, 1, 0], [], []>} : vector<3x8xf32>, vector<8x8xf32>, vector<3x8xf32> -> vector<3x8xf32>
    %cst_386 = arith.constant dense<0.000000e+00> : vector<3x8xf32>
    %344 = tpu.matmul %338, %342, %cst_386 {dimension_numbers = #tpu.dot_dimension_numbers<[1], [1], [0], [0], [0, 0, 1, 0], [], []>} : vector<3x8xf32>, vector<8x8xf32>, vector<3x8xf32> -> vector<3x8xf32>
    %c2_387 = arith.constant 2 : index
    %c3_388 = arith.constant 3 : index
    %c0_389 = arith.constant 0 : index
    %c0_390 = arith.constant 0 : index
    %c0_391 = arith.constant 0 : index
    %345 = vector.load %arg3[%c2_387, %c3_388, %c0_389, %c0_390, %c0_391] : memref<3x4x2x1x8xf32, #tpu.memory_space<vmem>>, vector<1x1x1x1x8xf32>
    %346 = vector.shape_cast %345 : vector<1x1x1x1x8xf32> to vector<1x8xf32>
    %347 = vector.broadcast %346 : vector<1x8xf32> to vector<3x8xf32>
    %348 = arith.mulf %343, %347 : vector<3x8xf32>
    %c2_392 = arith.constant 2 : index
    %c3_393 = arith.constant 3 : index
    %c0_394 = arith.constant 0 : index
    %c0_395 = arith.constant 0 : index
    %c0_396 = arith.constant 0 : index
    %349 = vector.load %arg4[%c2_392, %c3_393, %c0_394, %c0_395, %c0_396] : memref<3x4x2x1x8xf32, #tpu.memory_space<vmem>>, vector<1x1x1x1x8xf32>
    %350 = vector.shape_cast %349 : vector<1x1x1x1x8xf32> to vector<1x8xf32>
    %351 = vector.broadcast %350 : vector<1x8xf32> to vector<3x8xf32>
    %352 = arith.addf %348, %351 : vector<3x8xf32>
    %c2_397 = arith.constant 2 : index
    %c3_398 = arith.constant 3 : index
    %c1_399 = arith.constant 1 : index
    %c0_400 = arith.constant 0 : index
    %c0_401 = arith.constant 0 : index
    %353 = vector.load %arg3[%c2_397, %c3_398, %c1_399, %c0_400, %c0_401] : memref<3x4x2x1x8xf32, #tpu.memory_space<vmem>>, vector<1x1x1x1x8xf32>
    %354 = vector.shape_cast %353 : vector<1x1x1x1x8xf32> to vector<1x8xf32>
    %355 = vector.broadcast %354 : vector<1x8xf32> to vector<3x8xf32>
    %356 = arith.mulf %344, %355 : vector<3x8xf32>
    %c2_402 = arith.constant 2 : index
    %c3_403 = arith.constant 3 : index
    %c1_404 = arith.constant 1 : index
    %c0_405 = arith.constant 0 : index
    %c0_406 = arith.constant 0 : index
    %357 = vector.load %arg4[%c2_402, %c3_403, %c1_404, %c0_405, %c0_406] : memref<3x4x2x1x8xf32, #tpu.memory_space<vmem>>, vector<1x1x1x1x8xf32>
    %358 = vector.shape_cast %357 : vector<1x1x1x1x8xf32> to vector<1x8xf32>
    %359 = vector.broadcast %358 : vector<1x8xf32> to vector<3x8xf32>
    %360 = arith.addf %356, %359 : vector<3x8xf32>
    %361 = arith.negf %360 : vector<3x8xf32>
    %362 = math.exp %361 : vector<3x8xf32>
    %cst_407 = arith.constant 1.000000e+00 : f32
    %363 = vector.broadcast %cst_407 : f32 to vector<3x8xf32>
    %364 = arith.addf %363, %362 : vector<3x8xf32>
    %365 = arith.divf %363, %364 : vector<3x8xf32>
    %366 = arith.mulf %352, %365 : vector<3x8xf32>
    %367 = arith.addf %338, %366 : vector<3x8xf32>
    %cst_408 = arith.constant 0.707106769 : f32
    %368 = vector.broadcast %cst_408 : f32 to vector<3x8xf32>
    %369 = arith.mulf %367, %368 : vector<3x8xf32>
    %370 = arith.addf %246, %369 : vector<3x8xf32>
    %c0_409 = arith.constant 0 : index
    %c0_410 = arith.constant 0 : index
    %371 = vector.load %arg5[%c0_409, %c0_410] : memref<32x8xf32, #tpu.memory_space<vmem>>, vector<32x8xf32>
    %cst_411 = arith.constant dense<0.000000e+00> : vector<3x32xf32>
    %372 = tpu.matmul %370, %371, %cst_411 {dimension_numbers = #tpu.dot_dimension_numbers<[1], [1], [0], [0], [0, 0, 1, 0], [], []>} : vector<3x8xf32>, vector<32x8xf32>, vector<3x32xf32> -> vector<3x32xf32>
    %c0_412 = arith.constant 0 : index
    %c0_413 = arith.constant 0 : index
    %373 = vector.load %arg6[%c0_412, %c0_413] : memref<3x32xf32, #tpu.memory_space<vmem>>, vector<3x32xf32>
    tpu.vector_store %arg6[%c0_412, %c0_413], %372 {strides = array<i32>} : memref<3x32xf32, #tpu.memory_space<vmem>>, vector<3x32xf32>,
    return
  }
  func.func @transform_0(%arg0: i32) -> (i32, i32, i32) {
    %c0_i32 = arith.constant 0 : i32
    %c0_i32_0 = arith.constant 0 : i32
    %c0_i32_1 = arith.constant 0 : i32
    return %c0_i32, %arg0, %c0_i32_0 : i32, i32, i32
  }
  func.func @transform_1(%arg0: i32) -> (i32, i32, i32, i32, i32) {
    %c0_i32 = arith.constant 0 : i32
    %c0_i32_0 = arith.constant 0 : i32
    %c0_i32_1 = arith.constant 0 : i32
    %c0_i32_2 = arith.constant 0 : i32
    %c0_i32_3 = arith.constant 0 : i32
    %c0_i32_4 = arith.constant 0 : i32
    return %c0_i32, %c0_i32_0, %c0_i32_1, %c0_i32_2, %c0_i32_3 : i32, i32, i32, i32, i32
  }
  func.func @transform_2(%arg0: i32) -> (i32, i32, i32, i32, i32) {
    %c0_i32 = arith.constant 0 : i32
    %c0_i32_0 = arith.constant 0 : i32
    %c0_i32_1 = arith.constant 0 : i32
    %c0_i32_2 = arith.constant 0 : i32
    %c0_i32_3 = arith.constant 0 : i32
    %c0_i32_4 = arith.constant 0 : i32
    return %c0_i32, %c0_i32_0, %c0_i32_1, %c0_i32_2, %c0_i32_3 : i32, i32, i32, i32, i32
  }
  func.func @transform_3(%arg0: i32) -> (i32, i32, i32, i32, i32) {
    %c0_i32 = arith.constant 0 : i32
    %c0_i32_0 = arith.constant 0 : i32
    %c0_i32_1 = arith.constant 0 : i32
    %c0_i32_2 = arith.constant 0 : i32
    %c0_i32_3 = arith.constant 0 : i32
    %c0_i32_4 = arith.constant 0 : i32
    return %c0_i32, %c0_i32_0, %c0_i32_1, %c0_i32_2, %c0_i32_3 : i32, i32, i32, i32, i32
  }
  func.func @transform_4(%arg0: i32) -> (i32, i32) {
    %c0_i32 = arith.constant 0 : i32
    %c0_i32_0 = arith.constant 0 : i32
    %c0_i32_1 = arith.constant 0 : i32
    return %c0_i32, %c0_i32_0 : i32, i32
  }
  func.func @transform_5(%arg0: i32) -> (i32, i32) {
    %c0_i32 = arith.constant 0 : i32
    %c0_i32_0 = arith.constant 0 : i32
    return %arg0, %c0_i32 : i32, i32
  }
}

</mosaic_0001>

<llo_original>
// kernel: tpu_custom_call.1
$region0: #{tpu_custom_call.1}
  #allocation0 [shape = 'u32[]', space=smem, size = 0x4, offset = 0x4, fixed_abs, tag = 'smem constant byte address 0x4 - core index']
  #allocation1 [shape = 'u32[72,128]{1,0:T(1,128)}', space=vmem, size = 0x9000, scoped, tag = 'internal scratch']
  %s0 = inlined_call_operand.vmem [shape: f32[3,3,8], index: 0, kind: input, shape index: {}]
  %s1 = inlined_call_operand.hbm [shape: f32[3,4,2,8,8], index: 1, kind: input, shape index: {}]
  %s2 = inlined_call_operand.vmem [shape: f32[3,4,2,1,8], index: 2, kind: input, shape index: {}]
  %s3 = inlined_call_operand.hbm [shape: f32[3,4,2,1,8], index: 3, kind: input, shape index: {}]
  %s4 = inlined_call_operand.vmem [shape: f32[32,8], index: 4, kind: input, shape index: {}]
  %s5 = inlined_call_operand.hbm [shape: f32[3,32], index: 5, kind: output, shape index: {}]
  %s6 = sld [smem:[#allocation0]]
  $region38: #{tpu_custom_call.1} parent=0
    _
  %s8 = ssub.s32 1, %s6
  %s9 = scalar_select 0, %s8, %s6
  $region1: #{tpu_custom_call.1} parent=0
    #allocation2 [shape = 'u8[98304]{0}', space=vmem, size = 0x18000, scoped, tag = 'input window, operand 1, single buffered']
    #allocation3 [shape = 's32[1]{0}', space=sflag, size = 0x4, scoped, tag = 'scoped memory for tpu_custom_call.1']
    #allocation4 [shape = 's32[1]{0}', space=sflag, size = 0x4, scoped, tag = 'scoped memory for tpu_custom_call.1']
    #allocation5 [shape = 'u8[12288]{0}', space=vmem, size = 0x3000, scoped, tag = 'input window, operand 3, single buffered']
    #allocation6 [shape = 's32[1]{0}', space=sflag, size = 0x4, scoped, tag = 'scoped memory for tpu_custom_call.1']
    #allocation7 [shape = 'u8[2048]{0}', space=vmem, size = 0x800, scoped, tag = 'output window, operand 0, single buffered']
    %10 = vsyncpa [#allocation3], 0
    %11 = vsyncpa [#allocation6], 0
    %12 = vsyncpa [#allocation4], 0
    // Predicated region
    $region2: #{tpu_custom_call.1} parent=1 // pred_check
      _
    $region3: #{tpu_custom_call.1} parent=1 // pred_check_branch
      %14 = sbr.rel (0) target = $region5
    $region4: #{tpu_custom_call.1} parent=1 // pred_region
      _
    $region5: #{tpu_custom_call.1} parent=1 // pred_fallthru
      _
    // Predicated region
    $region6: #{tpu_custom_call.1} parent=1 // pred_check
      _
    $region7: #{tpu_custom_call.1} parent=1 // pred_check_branch
      %16 = sbr.rel (0) target = $region9
    $region8: #{tpu_custom_call.1} parent=1 // pred_region
      %18 = vsyncadd [#allocation3], 0
      %s19 = sshll.u32 %s1, 4
      %s20 = int_to_ptr.hbm [resolvable:$true] %s19
      %s21 = sshll.u32 [#allocation2], 4
      %s22 = int_to_ptr.vmem [resolvable:$true] %s21
      %27 = dma.hbm_to_vmem [thread:$0]  %s20, 3072, %s22, [#allocation3], 128, 128, 8
    $region9: #{tpu_custom_call.1} parent=1 // pred_fallthru
      _
    // Predicated region
    $region10: #{tpu_custom_call.1} parent=1 // pred_check
      _
    $region11: #{tpu_custom_call.1} parent=1 // pred_check_branch
      %29 = sbr.rel (0) target = $region13
    $region12: #{tpu_custom_call.1} parent=1 // pred_region
      _
    $region13: #{tpu_custom_call.1} parent=1 // pred_fallthru
      _
    // Predicated region
    $region14: #{tpu_custom_call.1} parent=1 // pred_check
      _
    $region15: #{tpu_custom_call.1} parent=1 // pred_check_branch
      %31 = sbr.rel (0) target = $region17
    $region16: #{tpu_custom_call.1} parent=1 // pred_region
      %33 = vsyncadd [#allocation6], 0
      %s34 = sshll.u32 %s3, 4
      %s35 = int_to_ptr.hbm [resolvable:$true] %s34
      %s36 = sshll.u32 [#allocation5], 4
      %s37 = int_to_ptr.vmem [resolvable:$true] %s36
      %42 = dma.hbm_to_vmem [thread:$0]  %s35, 384, %s37, [#allocation6], 16, 16, 1
    $region17: #{tpu_custom_call.1} parent=1 // pred_fallthru
      _
    // Predicated region
    $region18: #{tpu_custom_call.1} parent=1 // pred_check
      _
    $region19: #{tpu_custom_call.1} parent=1 // pred_check_branch
      %44 = sbr.rel (0) target = $region21
    $region20: #{tpu_custom_call.1} parent=1 // pred_region
      _
    $region21: #{tpu_custom_call.1} parent=1 // pred_fallthru
      _
    // Predicated region
    $region22: #{tpu_custom_call.1} parent=1 // pred_check
      _
    $region23: #{tpu_custom_call.1} parent=1 // pred_check_branch
      %46 = sbr.rel (0) target = $region25
    $region24: #{tpu_custom_call.1} parent=1 // pred_region
      %48 = dma.done [#allocation3], 3072
    $region25: #{tpu_custom_call.1} parent=1 // pred_fallthru
      _
    // Predicated region
    $region26: #{tpu_custom_call.1} parent=1 // pred_check
      _
    $region27: #{tpu_custom_call.1} parent=1 // pred_check_branch
      %50 = sbr.rel (0) target = $region29
    $region28: #{tpu_custom_call.1} parent=1 // pred_region
      %52 = dma.done [#allocation6], 384
    $region29: #{tpu_custom_call.1} parent=1 // pred_fallthru
      _
    %v53 = vld [vmem:[%s0] sm:$0x7]
    %v54 = vld [vmem:[#allocation2] sm:$0xff]
    %s55 = scalar_lea.vmem [#allocation2], 8
    %v56 = vld [vmem:[%s55] sm:$0xff]
    %vm57 = vcmask 64512
    %v59 = vsel %vm57, %v53, 0
    %v62 = vsel %vm57, %v54, 0
    %64 = vmatpush.xpose.msra.mxu0 0.0
    %65 = vmatpush.xpose.msra.mxu0 0.0
    %66 = vmatpush.xpose.msra.mxu0 0.0
    %67 = vmatpush.xpose.msra.mxu0 0.0
    %68 = vmatpush.xpose.msra.mxu0 0.0
    %69 = vmatpush.xpose.msra.mxu0 0.0
    %70 = vmatpush.xpose.msra.mxu0 0.0
    %71 = vmatpush.xpose.msra.mxu0 0.0
    %72 = vmatpush.xpose.msra.mxu0 0.0
    %73 = vmatpush.xpose.msra.mxu0 0.0
    %74 = vmatpush.xpose.msra.mxu0 0.0
    %75 = vmatpush.xpose.msra.mxu0 0.0
    %76 = vmatpush.xpose.msra.mxu0 0.0
    %77 = vmatpush.xpose.msra.mxu0 0.0
    %78 = vmatpush.xpose.msra.mxu0 0.0
    %79 = vmatpush.xpose.msra.mxu0 %v62
    %80 = vmatmul.f32.gmra.mxu0 %v59
    %v81 = vpop.f32.mrf.mxu0
    %v82 = vadd.f32 0.0, %v81
    %83 = vdwg.mxu0
    %v85 = vsel %vm57, %v56, 0
    %87 = vmatpush.xpose.msra.mxu0 0.0
    %88 = vmatpush.xpose.msra.mxu0 0.0
    %89 = vmatpush.xpose.msra.mxu0 0.0
    %90 = vmatpush.xpose.msra.mxu0 0.0
    %91 = vmatpush.xpose.msra.mxu0 0.0
    %92 = vmatpush.xpose.msra.mxu0 0.0
    %93 = vmatpush.xpose.msra.mxu0 0.0
    %94 = vmatpush.xpose.msra.mxu0 0.0
    %95 = vmatpush.xpose.msra.mxu0 0.0
    %96 = vmatpush.xpose.msra.mxu0 0.0
    %97 = vmatpush.xpose.msra.mxu0 0.0
    %98 = vmatpush.xpose.msra.mxu0 0.0
    %99 = vmatpush.xpose.msra.mxu0 0.0
    %100 = vmatpush.xpose.msra.mxu0 0.0
    %101 = vmatpush.xpose.msra.mxu0 0.0
    %102 = vmatpush.xpose.msra.mxu0 %v85
    %103 = vmatmul.f32.gmra.mxu0 %v59
    %v104 = vpop.f32.mrf.mxu0
    %v105 = vadd.f32 0.0, %v104
    %106 = vdwg.mxu0
    %v107 = vld [vmem:[%s2] sm:$0x1]
    %v109 = vperm.slane %v107, 0
    %v111 = vmul.f32 %v82, %v109
    %v112 = vld [vmem:[#allocation5] sm:$0x1]
    %v114 = vperm.slane %v112, 0
    %v116 = vadd.f32 %v111, %v114
    %s117 = scalar_lea.vmem %s2, 1
    %v118 = vld [vmem:[%s117] sm:$0x1]
    %v120 = vperm.slane %v118, 0
    %v122 = vmul.f32 %v105, %v120
    %s123 = scalar_lea.vmem [#allocation5], 1
    %v124 = vld [vmem:[%s123] sm:$0x1]
    %v126 = vperm.slane %v124, 0
    %v128 = vadd.f32 %v122, %v126
    %v129 = vxor.u32 %v128, 2147483648
    %v130 = vmul.f32 %v129, 1.442695
    %v131 = vpow.pop %v130
    %v132 = vadd.f32 %v131, 1.0
    %v133 = vrcp.pop %v132
    %v134 = vmul.f32 %v132, %v133
    %v135 = vsub.f32 1.0, %v134
    %v136 = vmul.f32 %v133, %v135
    %v137 = vadd.f32 %v133, %v136
    %vm138 = vweird.f32 %v132
    %vm139 = vweird.f32 %v133
    %vm140 = vmor %vm138, %vm139
    %v141 = vsel %vm140, %v133, %v137
    %v142 = vand.u32 2147483647, %v132
    %vm143 = vcmp.eq.f32.partialorder %v142, 8.507059e+37
    %v144 = vand.u32 %v132, 2147483648
    %v145 = vor.u32 1.1754944e-38, %v144
    %v146 = vsel %vm143, %v145, %v141
    %v147 = vmul.f32 1.0, %v146
    %v148 = vmul.f32 %v116, %v147
    %s149 = scalar_lea.vmem [#allocation2], 16
    %v150 = vld [vmem:[%s149] sm:$0xff]
    %s151 = scalar_lea.vmem [#allocation2], 24
    %v152 = vld [vmem:[%s151] sm:$0xff]
    %v154 = vsel %vm57, %v148, 0
    %v157 = vsel %vm57, %v150, 0
    %159 = vmatpush.xpose.msra.mxu0 0.0
    %160 = vmatpush.xpose.msra.mxu0 0.0
    %161 = vmatpush.xpose.msra.mxu0 0.0
    %162 = vmatpush.xpose.msra.mxu0 0.0
    %163 = vmatpush.xpose.msra.mxu0 0.0
    %164 = vmatpush.xpose.msra.mxu0 0.0
    %165 = vmatpush.xpose.msra.mxu0 0.0
    %166 = vmatpush.xpose.msra.mxu0 0.0
    %167 = vmatpush.xpose.msra.mxu0 0.0
    %168 = vmatpush.xpose.msra.mxu0 0.0
    %169 = vmatpush.xpose.msra.mxu0 0.0
    %170 = vmatpush.xpose.msra.mxu0 0.0
    %171 = vmatpush.xpose.msra.mxu0 0.0
    %172 = vmatpush.xpose.msra.mxu0 0.0
    %173 = vmatpush.xpose.msra.mxu0 0.0
    %174 = vmatpush.xpose.msra.mxu0 %v157
    %175 = vmatmul.f32.gmra.mxu0 %v154
    %v176 = vpop.f32.mrf.mxu0
    %v177 = vadd.f32 0.0, %v176
    %178 = vdwg.mxu0
    %v180 = vsel %vm57, %v152, 0
    %182 = vmatpush.xpose.msra.mxu0 0.0
    %183 = vmatpush.xpose.msra.mxu0 0.0
    %184 = vmatpush.xpose.msra.mxu0 0.0
    %185 = vmatpush.xpose.msra.mxu0 0.0
    %186 = vmatpush.xpose.msra.mxu0 0.0
    %187 = vmatpush.xpose.msra.mxu0 0.0
    %188 = vmatpush.xpose.msra.mxu0 0.0
    %189 = vmatpush.xpose.msra.mxu0 0.0
    %190 = vmatpush.xpose.msra.mxu0 0.0
    %191 = vmatpush.xpose.msra.mxu0 0.0
    %192 = vmatpush.xpose.msra.mxu0 0.0
    %193 = vmatpush.xpose.msra.mxu0 0.0
    %194 = vmatpush.xpose.msra.mxu0 0.0
    %195 = vmatpush.xpose.msra.mxu0 0.0
    %196 = vmatpush.xpose.msra.mxu0 0.0
    %197 = vmatpush.xpose.msra.mxu0 %v180
    %198 = vmatmul.f32.gmra.mxu0 %v154
    %v199 = vpop.f32.mrf.mxu0
    %v200 = vadd.f32 0.0, %v199
    %201 = vdwg.mxu0
    %s202 = scalar_lea.vmem %s2, 2
    %v203 = vld [vmem:[%s202] sm:$0x1]
    %v205 = vperm.slane %v203, 0
    %v207 = vmul.f32 %v177, %v205
    %s208 = scalar_lea.vmem [#allocation5], 2
    %v209 = vld [vmem:[%s208] sm:$0x1]
    %v211 = vperm.slane %v209, 0
    %v213 = vadd.f32 %v207, %v211
    %s214 = scalar_lea.vmem %s2, 3
    %v215 = vld [vmem:[%s214] sm:$0x1]
    %v217 = vperm.slane %v215, 0
    %v219 = vmul.f32 %v200, %v217
    %s220 = scalar_lea.vmem [#allocation5], 3
    %v221 = vld [vmem:[%s220] sm:$0x1]
    %v223 = vperm.slane %v221, 0
    %v225 = vadd.f32 %v219, %v223
    %v226 = vxor.u32 %v225, 2147483648
    %v227 = vmul.f32 %v226, 1.442695
    %v228 = vpow.pop %v227
    %v229 = vadd.f32 %v228, 1.0
    %v230 = vrcp.pop %v229
    %v231 = vmul.f32 %v229, %v230
    %v232 = vsub.f32 1.0, %v231
    %v233 = vmul.f32 %v230, %v232
    %v234 = vadd.f32 %v230, %v233
    %vm235 = vweird.f32 %v229
    %vm236 = vweird.f32 %v230
    %vm237 = vmor %vm235, %vm236
    %v238 = vsel %vm237, %v230, %v234
    %v239 = vand.u32 2147483647, %v229
    %vm240 = vcmp.eq.f32.partialorder %v239, 8.507059e+37
    %v241 = vand.u32 %v229, 2147483648
    %v242 = vor.u32 1.1754944e-38, %v241
    %v243 = vsel %vm240, %v242, %v238
    %v244 = vmul.f32 1.0, %v243
    %v245 = vmul.f32 %v213, %v244
    %v246 = vadd.f32 %v148, %v245
    %v247 = vmul.f32 %v246, 0.70710677
    %s248 = scalar_lea.vmem [#allocation2], 32
    %v249 = vld [vmem:[%s248] sm:$0xff]
    %s250 = scalar_lea.vmem [#allocation2], 40
    %v251 = vld [vmem:[%s250] sm:$0xff]
    %v253 = vsel %vm57, %v247, 0
    %v256 = vsel %vm57, %v249, 0
    %258 = vmatpush.xpose.msra.mxu0 0.0
    %259 = vmatpush.xpose.msra.mxu0 0.0
    %260 = vmatpush.xpose.msra.mxu0 0.0
    %261 = vmatpush.xpose.msra.mxu0 0.0
    %262 = vmatpush.xpose.msra.mxu0 0.0
    %263 = vmatpush.xpose.msra.mxu0 0.0
    %264 = vmatpush.xpose.msra.mxu0 0.0
    %265 = vmatpush.xpose.msra.mxu0 0.0
    %266 = vmatpush.xpose.msra.mxu0 0.0
    %267 = vmatpush.xpose.msra.mxu0 0.0
    %268 = vmatpush.xpose.msra.mxu0 0.0
    %269 = vmatpush.xpose.msra.mxu0 0.0
    %270 = vmatpush.xpose.msra.mxu0 0.0
    %271 = vmatpush.xpose.msra.mxu0 0.0
    %272 = vmatpush.xpose.msra.mxu0 0.0
    %273 = vmatpush.xpose.msra.mxu0 %v256
    %274 = vmatmul.f32.gmra.mxu0 %v253
    %v275 = vpop.f32.mrf.mxu0
    %v276 = vadd.f32 0.0, %v275
    %277 = vdwg.mxu0
    %v279 = vsel %vm57, %v251, 0
    %281 = vmatpush.xpose.msra.mxu0 0.0
    %282 = vmatpush.xpose.msra.mxu0 0.0
    %283 = vmatpush.xpose.msra.mxu0 0.0
    %284 = vmatpush.xpose.msra.mxu0 0.0
    %285 = vmatpush.xpose.msra.mxu0 0.0
    %286 = vmatpush.xpose.msra.mxu0 0.0
    %287 = vmatpush.xpose.msra.mxu0 0.0
    %288 = vmatpush.xpose.msra.mxu0 0.0
    %289 = vmatpush.xpose.msra.mxu0 0.0
    %290 = vmatpush.xpose.msra.mxu0 0.0
    %291 = vmatpush.xpose.msra.mxu0 0.0
    %292 = vmatpush.xpose.msra.mxu0 0.0
    %293 = vmatpush.xpose.msra.mxu0 0.0
    %294 = vmatpush.xpose.msra.mxu0 0.0
    %295 = vmatpush.xpose.msra.mxu0 0.0
    %296 = vmatpush.xpose.msra.mxu0 %v279
    %297 = vmatmul.f32.gmra.mxu0 %v253
    %v298 = vpop.f32.mrf.mxu0
    %v299 = vadd.f32 0.0, %v298
    %300 = vdwg.mxu0
    %s301 = scalar_lea.vmem %s2, 4
    %v302 = vld [vmem:[%s301] sm:$0x1]
    %v304 = vperm.slane %v302, 0
    %v306 = vmul.f32 %v276, %v304
    %s307 = scalar_lea.vmem [#allocation5], 4
    %v308 = vld [vmem:[%s307] sm:$0x1]
    %v310 = vperm.slane %v308, 0
    %v312 = vadd.f32 %v306, %v310
    %s313 = scalar_lea.vmem %s2, 5
    %v314 = vld [vmem:[%s313] sm:$0x1]
    %v316 = vperm.slane %v314, 0
    %v318 = vmul.f32 %v299, %v316
    %s319 = scalar_lea.vmem [#allocation5], 5
    %v320 = vld [vmem:[%s319] sm:$0x1]
    %v322 = vperm.slane %v320, 0
    %v324 = vadd.f32 %v318, %v322
    %v325 = vxor.u32 %v324, 2147483648
    %v326 = vmul.f32 %v325, 1.442695
    %v327 = vpow.pop %v326
    %v328 = vadd.f32 %v327, 1.0
    %v329 = vrcp.pop %v328
    %v330 = vmul.f32 %v328, %v329
    %v331 = vsub.f32 1.0, %v330
    %v332 = vmul.f32 %v329, %v331
    %v333 = vadd.f32 %v329, %v332
    %vm334 = vweird.f32 %v328
    %vm335 = vweird.f32 %v329
    %vm336 = vmor %vm334, %vm335
    %v337 = vsel %vm336, %v329, %v333
    %v338 = vand.u32 2147483647, %v328
    %vm339 = vcmp.eq.f32.partialorder %v338, 8.507059e+37
    %v340 = vand.u32 %v328, 2147483648
    %v341 = vor.u32 1.1754944e-38, %v340
    %v342 = vsel %vm339, %v341, %v337
    %v343 = vmul.f32 1.0, %v342
    %v344 = vmul.f32 %v312, %v343
    %v345 = vadd.f32 %v247, %v344
    %v346 = vmul.f32 %v345, 0.70710677
    %s347 = scalar_lea.vmem [#allocation2], 48
    %v348 = vld [vmem:[%s347] sm:$0xff]
    %s349 = scalar_lea.vmem [#allocation2], 56
    %v350 = vld [vmem:[%s349] sm:$0xff]
    %v352 = vsel %vm57, %v346, 0
    %v355 = vsel %vm57, %v348, 0
    %357 = vmatpush.xpose.msra.mxu0 0.0
    %358 = vmatpush.xpose.msra.mxu0 0.0
    %359 = vmatpush.xpose.msra.mxu0 0.0
    %360 = vmatpush.xpose.msra.mxu0 0.0
    %361 = vmatpush.xpose.msra.mxu0 0.0
    %362 = vmatpush.xpose.msra.mxu0 0.0
    %363 = vmatpush.xpose.msra.mxu0 0.0
    %364 = vmatpush.xpose.msra.mxu0 0.0
    %365 = vmatpush.xpose.msra.mxu0 0.0
    %366 = vmatpush.xpose.msra.mxu0 0.0
    %367 = vmatpush.xpose.msra.mxu0 0.0
    %368 = vmatpush.xpose.msra.mxu0 0.0
    %369 = vmatpush.xpose.msra.mxu0 0.0
    %370 = vmatpush.xpose.msra.mxu0 0.0
    %371 = vmatpush.xpose.msra.mxu0 0.0
    %372 = vmatpush.xpose.msra.mxu0 %v355
    %373 = vmatmul.f32.gmra.mxu0 %v352
    %v374 = vpop.f32.mrf.mxu0
    %v375 = vadd.f32 0.0, %v374
    %376 = vdwg.mxu0
    %v378 = vsel %vm57, %v350, 0
    %380 = vmatpush.xpose.msra.mxu0 0.0
    %381 = vmatpush.xpose.msra.mxu0 0.0
    %382 = vmatpush.xpose.msra.mxu0 0.0
    %383 = vmatpush.xpose.msra.mxu0 0.0
    %384 = vmatpush.xpose.msra.mxu0 0.0
    %385 = vmatpush.xpose.msra.mxu0 0.0
    %386 = vmatpush.xpose.msra.mxu0 0.0
    %387 = vmatpush.xpose.msra.mxu0 0.0
    %388 = vmatpush.xpose.msra.mxu0 0.0
    %389 = vmatpush.xpose.msra.mxu0 0.0
    %390 = vmatpush.xpose.msra.mxu0 0.0
    %391 = vmatpush.xpose.msra.mxu0 0.0
    %392 = vmatpush.xpose.msra.mxu0 0.0
    %393 = vmatpush.xpose.msra.mxu0 0.0
    %394 = vmatpush.xpose.msra.mxu0 0.0
    %395 = vmatpush.xpose.msra.mxu0 %v378
    %396 = vmatmul.f32.gmra.mxu0 %v352
    %v397 = vpop.f32.mrf.mxu0
    %v398 = vadd.f32 0.0, %v397
    %399 = vdwg.mxu0
    %s400 = scalar_lea.vmem %s2, 6
    %v401 = vld [vmem:[%s400] sm:$0x1]
    %v403 = vperm.slane %v401, 0
    %v405 = vmul.f32 %v375, %v403
    %s406 = scalar_lea.vmem [#allocation5], 6
    %v407 = vld [vmem:[%s406] sm:$0x1]
    %v409 = vperm.slane %v407, 0
    %v411 = vadd.f32 %v405, %v409
    %s412 = scalar_lea.vmem %s2, 7
    %v413 = vld [vmem:[%s412] sm:$0x1]
    %v415 = vperm.slane %v413, 0
    %v417 = vmul.f32 %v398, %v415
    %s418 = scalar_lea.vmem [#allocation5], 7
    %v419 = vld [vmem:[%s418] sm:$0x1]
    %v421 = vperm.slane %v419, 0
    %v423 = vadd.f32 %v417, %v421
    %v424 = vxor.u32 %v423, 2147483648
    %v425 = vmul.f32 %v424, 1.442695
    %v426 = vpow.pop %v425
    %v427 = vadd.f32 %v426, 1.0
    %v428 = vrcp.pop %v427
    %v429 = vmul.f32 %v427, %v428
    %v430 = vsub.f32 1.0, %v429
    %v431 = vmul.f32 %v428, %v430
    %v432 = vadd.f32 %v428, %v431
    %vm433 = vweird.f32 %v427
    %vm434 = vweird.f32 %v428
    %vm435 = vmor %vm433, %vm434
    %v436 = vsel %vm435, %v428, %v432
    %v437 = vand.u32 2147483647, %v427
    %vm438 = vcmp.eq.f32.partialorder %v437, 8.507059e+37
    %v439 = vand.u32 %v427, 2147483648
    %v440 = vor.u32 1.1754944e-38, %v439
    %v441 = vsel %vm438, %v440, %v436
    %v442 = vmul.f32 1.0, %v441
    %v443 = vmul.f32 %v411, %v442
    %v444 = vadd.f32 %v346, %v443
    %v445 = vmul.f32 %v444, 0.70710677
    %s446 = scalar_lea.vmem %s0, 4
    %v447 = vld [vmem:[%s446] sm:$0x7]
    %s448 = scalar_lea.vmem [#allocation2], 64
    %v449 = vld [vmem:[%s448] sm:$0xff]
    %s450 = scalar_lea.vmem [#allocation2], 72
    %v451 = vld [vmem:[%s450] sm:$0xff]
    %v453 = vsel %vm57, %v447, 0
    %v456 = vsel %vm57, %v449, 0
    %458 = vmatpush.xpose.msra.mxu0 0.0
    %459 = vmatpush.xpose.msra.mxu0 0.0
    %460 = vmatpush.xpose.msra.mxu0 0.0
    %461 = vmatpush.xpose.msra.mxu0 0.0
    %462 = vmatpush.xpose.msra.mxu0 0.0
    %463 = vmatpush.xpose.msra.mxu0 0.0
    %464 = vmatpush.xpose.msra.mxu0 0.0
    %465 = vmatpush.xpose.msra.mxu0 0.0
    %466 = vmatpush.xpose.msra.mxu0 0.0
    %467 = vmatpush.xpose.msra.mxu0 0.0
    %468 = vmatpush.xpose.msra.mxu0 0.0
    %469 = vmatpush.xpose.msra.mxu0 0.0
    %470 = vmatpush.xpose.msra.mxu0 0.0
    %471 = vmatpush.xpose.msra.mxu0 0.0
    %472 = vmatpush.xpose.msra.mxu0 0.0
    %473 = vmatpush.xpose.msra.mxu0 %v456
    %474 = vmatmul.f32.gmra.mxu0 %v453
    %v475 = vpop.f32.mrf.mxu0
    %v476 = vadd.f32 0.0, %v475
    %477 = vdwg.mxu0
    %v479 = vsel %vm57, %v451, 0
    %481 = vmatpush.xpose.msra.mxu0 0.0
    %482 = vmatpush.xpose.msra.mxu0 0.0
    %483 = vmatpush.xpose.msra.mxu0 0.0
    %484 = vmatpush.xpose.msra.mxu0 0.0
    %485 = vmatpush.xpose.msra.mxu0 0.0
    %486 = vmatpush.xpose.msra.mxu0 0.0
    %487 = vmatpush.xpose.msra.mxu0 0.0
    %488 = vmatpush.xpose.msra.mxu0 0.0
    %489 = vmatpush.xpose.msra.mxu0 0.0
    %490 = vmatpush.xpose.msra.mxu0 0.0
    %491 = vmatpush.xpose.msra.mxu0 0.0
    %492 = vmatpush.xpose.msra.mxu0 0.0
    %493 = vmatpush.xpose.msra.mxu0 0.0
    %494 = vmatpush.xpose.msra.mxu0 0.0
    %495 = vmatpush.xpose.msra.mxu0 0.0
    %496 = vmatpush.xpose.msra.mxu0 %v479
    %497 = vmatmul.f32.gmra.mxu0 %v453
    %v498 = vpop.f32.mrf.mxu0
    %v499 = vadd.f32 0.0, %v498
    %500 = vdwg.mxu0
    %s501 = scalar_lea.vmem %s2, 8
    %v502 = vld [vmem:[%s501] sm:$0x1]
    %v504 = vperm.slane %v502, 0
    %v506 = vmul.f32 %v476, %v504
    %s507 = scalar_lea.vmem [#allocation5], 8
    %v508 = vld [vmem:[%s507] sm:$0x1]
    %v510 = vperm.slane %v508, 0
    %v512 = vadd.f32 %v506, %v510
    %s513 = scalar_lea.vmem %s2, 9
    %v514 = vld [vmem:[%s513] sm:$0x1]
    %v516 = vperm.slane %v514, 0
    %v518 = vmul.f32 %v499, %v516
    %s519 = scalar_lea.vmem [#allocation5], 9
    %v520 = vld [vmem:[%s519] sm:$0x1]
    %v522 = vperm.slane %v520, 0
    %v524 = vadd.f32 %v518, %v522
    %v525 = vxor.u32 %v524, 2147483648
    %v526 = vmul.f32 %v525, 1.442695
    %v527 = vpow.pop %v526
    %v528 = vadd.f32 %v527, 1.0
    %v529 = vrcp.pop %v528
    %v530 = vmul.f32 %v528, %v529
    %v531 = vsub.f32 1.0, %v530
    %v532 = vmul.f32 %v529, %v531
    %v533 = vadd.f32 %v529, %v532
    %vm534 = vweird.f32 %v528
    %vm535 = vweird.f32 %v529
    %vm536 = vmor %vm534, %vm535
    %v537 = vsel %vm536, %v529, %v533
    %v538 = vand.u32 2147483647, %v528
    %vm539 = vcmp.eq.f32.partialorder %v538, 8.507059e+37
    %v540 = vand.u32 %v528, 2147483648
    %v541 = vor.u32 1.1754944e-38, %v540
    %v542 = vsel %vm539, %v541, %v537
    %v543 = vmul.f32 1.0, %v542
    %v544 = vmul.f32 %v512, %v543
    %s545 = scalar_lea.vmem [#allocation2], 80
    %v546 = vld [vmem:[%s545] sm:$0xff]
    %s547 = scalar_lea.vmem [#allocation2], 88
    %v548 = vld [vmem:[%s547] sm:$0xff]
    %v550 = vsel %vm57, %v544, 0
    %v553 = vsel %vm57, %v546, 0
    %555 = vmatpush.xpose.msra.mxu0 0.0
    %556 = vmatpush.xpose.msra.mxu0 0.0
    %557 = vmatpush.xpose.msra.mxu0 0.0
    %558 = vmatpush.xpose.msra.mxu0 0.0
    %559 = vmatpush.xpose.msra.mxu0 0.0
    %560 = vmatpush.xpose.msra.mxu0 0.0
    %561 = vmatpush.xpose.msra.mxu0 0.0
    %562 = vmatpush.xpose.msra.mxu0 0.0
    %563 = vmatpush.xpose.msra.mxu0 0.0
    %564 = vmatpush.xpose.msra.mxu0 0.0
    %565 = vmatpush.xpose.msra.mxu0 0.0
    %566 = vmatpush.xpose.msra.mxu0 0.0
    %567 = vmatpush.xpose.msra.mxu0 0.0
    %568 = vmatpush.xpose.msra.mxu0 0.0
    %569 = vmatpush.xpose.msra.mxu0 0.0
    %570 = vmatpush.xpose.msra.mxu0 %v553
    %571 = vmatmul.f32.gmra.mxu0 %v550
    %v572 = vpop.f32.mrf.mxu0
    %v573 = vadd.f32 0.0, %v572
    %574 = vdwg.mxu0
    %v576 = vsel %vm57, %v548, 0
    %578 = vmatpush.xpose.msra.mxu0 0.0
    %579 = vmatpush.xpose.msra.mxu0 0.0
    %580 = vmatpush.xpose.msra.mxu0 0.0
    %581 = vmatpush.xpose.msra.mxu0 0.0
    %582 = vmatpush.xpose.msra.mxu0 0.0
    %583 = vmatpush.xpose.msra.mxu0 0.0
    %584 = vmatpush.xpose.msra.mxu0 0.0
    %585 = vmatpush.xpose.msra.mxu0 0.0
    %586 = vmatpush.xpose.msra.mxu0 0.0
    %587 = vmatpush.xpose.msra.mxu0 0.0
    %588 = vmatpush.xpose.msra.mxu0 0.0
    %589 = vmatpush.xpose.msra.mxu0 0.0
    %590 = vmatpush.xpose.msra.mxu0 0.0
    %591 = vmatpush.xpose.msra.mxu0 0.0
    %592 = vmatpush.xpose.msra.mxu0 0.0
    %593 = vmatpush.xpose.msra.mxu0 %v576
    %594 = vmatmul.f32.gmra.mxu0 %v550
    %v595 = vpop.f32.mrf.mxu0
    %v596 = vadd.f32 0.0, %v595
    %597 = vdwg.mxu0
    %s598 = scalar_lea.vmem %s2, 10
    %v599 = vld [vmem:[%s598] sm:$0x1]
    %v601 = vperm.slane %v599, 0
    %v603 = vmul.f32 %v573, %v601
    %s604 = scalar_lea.vmem [#allocation5], 10
    %v605 = vld [vmem:[%s604] sm:$0x1]
    %v607 = vperm.slane %v605, 0
    %v609 = vadd.f32 %v603, %v607
    %s610 = scalar_lea.vmem %s2, 11
    %v611 = vld [vmem:[%s610] sm:$0x1]
    %v613 = vperm.slane %v611, 0
    %v615 = vmul.f32 %v596, %v613
    %s616 = scalar_lea.vmem [#allocation5], 11
    %v617 = vld [vmem:[%s616] sm:$0x1]
    %v619 = vperm.slane %v617, 0
    %v621 = vadd.f32 %v615, %v619
    %v622 = vxor.u32 %v621, 2147483648
    %v623 = vmul.f32 %v622, 1.442695
    %v624 = vpow.pop %v623
    %v625 = vadd.f32 %v624, 1.0
    %v626 = vrcp.pop %v625
    %v627 = vmul.f32 %v625, %v626
    %v628 = vsub.f32 1.0, %v627
    %v629 = vmul.f32 %v626, %v628
    %v630 = vadd.f32 %v626, %v629
    %vm631 = vweird.f32 %v625
    %vm632 = vweird.f32 %v626
    %vm633 = vmor %vm631, %vm632
    %v634 = vsel %vm633, %v626, %v630
    %v635 = vand.u32 2147483647, %v625
    %vm636 = vcmp.eq.f32.partialorder %v635, 8.507059e+37
    %v637 = vand.u32 %v625, 2147483648
    %v638 = vor.u32 1.1754944e-38, %v637
    %v639 = vsel %vm636, %v638, %v634
    %v640 = vmul.f32 1.0, %v639
    %v641 = vmul.f32 %v609, %v640
    %v642 = vadd.f32 %v544, %v641
    %v643 = vmul.f32 %v642, 0.70710677
    %s644 = scalar_lea.vmem [#allocation2], 96
    %v645 = vld [vmem:[%s644] sm:$0xff]
    %s646 = scalar_lea.vmem [#allocation2], 104
    %v647 = vld [vmem:[%s646] sm:$0xff]
    %v649 = vsel %vm57, %v643, 0
    %v652 = vsel %vm57, %v645, 0
    %654 = vmatpush.xpose.msra.mxu0 0.0
    %655 = vmatpush.xpose.msra.mxu0 0.0
    %656 = vmatpush.xpose.msra.mxu0 0.0
    %657 = vmatpush.xpose.msra.mxu0 0.0
    %658 = vmatpush.xpose.msra.mxu0 0.0
    %659 = vmatpush.xpose.msra.mxu0 0.0
    %660 = vmatpush.xpose.msra.mxu0 0.0
    %661 = vmatpush.xpose.msra.mxu0 0.0
    %662 = vmatpush.xpose.msra.mxu0 0.0
    %663 = vmatpush.xpose.msra.mxu0 0.0
    %664 = vmatpush.xpose.msra.mxu0 0.0
    %665 = vmatpush.xpose.msra.mxu0 0.0
    %666 = vmatpush.xpose.msra.mxu0 0.0
    %667 = vmatpush.xpose.msra.mxu0 0.0
    %668 = vmatpush.xpose.msra.mxu0 0.0
    %669 = vmatpush.xpose.msra.mxu0 %v652
    %670 = vmatmul.f32.gmra.mxu0 %v649
    %v671 = vpop.f32.mrf.mxu0
    %v672 = vadd.f32 0.0, %v671
    %673 = vdwg.mxu0
    %v675 = vsel %vm57, %v647, 0
    %677 = vmatpush.xpose.msra.mxu0 0.0
    %678 = vmatpush.xpose.msra.mxu0 0.0
    %679 = vmatpush.xpose.msra.mxu0 0.0
    %680 = vmatpush.xpose.msra.mxu0 0.0
    %681 = vmatpush.xpose.msra.mxu0 0.0
    %682 = vmatpush.xpose.msra.mxu0 0.0
    %683 = vmatpush.xpose.msra.mxu0 0.0
    %684 = vmatpush.xpose.msra.mxu0 0.0
    %685 = vmatpush.xpose.msra.mxu0 0.0
    %686 = vmatpush.xpose.msra.mxu0 0.0
    %687 = vmatpush.xpose.msra.mxu0 0.0
    %688 = vmatpush.xpose.msra.mxu0 0.0
    %689 = vmatpush.xpose.msra.mxu0 0.0
    %690 = vmatpush.xpose.msra.mxu0 0.0
    %691 = vmatpush.xpose.msra.mxu0 0.0
    %692 = vmatpush.xpose.msra.mxu0 %v675
    %693 = vmatmul.f32.gmra.mxu0 %v649
    %v694 = vpop.f32.mrf.mxu0
    %v695 = vadd.f32 0.0, %v694
    %696 = vdwg.mxu0
    %s697 = scalar_lea.vmem %s2, 12
    %v698 = vld [vmem:[%s697] sm:$0x1]
    %v700 = vperm.slane %v698, 0
    %v702 = vmul.f32 %v672, %v700
    %s703 = scalar_lea.vmem [#allocation5], 12
    %v704 = vld [vmem:[%s703] sm:$0x1]
    %v706 = vperm.slane %v704, 0
    %v708 = vadd.f32 %v702, %v706
    %s709 = scalar_lea.vmem %s2, 13
    %v710 = vld [vmem:[%s709] sm:$0x1]
    %v712 = vperm.slane %v710, 0
    %v714 = vmul.f32 %v695, %v712
    %s715 = scalar_lea.vmem [#allocation5], 13
    %v716 = vld [vmem:[%s715] sm:$0x1]
    %v718 = vperm.slane %v716, 0
    %v720 = vadd.f32 %v714, %v718
    %v721 = vxor.u32 %v720, 2147483648
    %v722 = vmul.f32 %v721, 1.442695
    %v723 = vpow.pop %v722
    %v724 = vadd.f32 %v723, 1.0
    %v725 = vrcp.pop %v724
    %v726 = vmul.f32 %v724, %v725
    %v727 = vsub.f32 1.0, %v726
    %v728 = vmul.f32 %v725, %v727
    %v729 = vadd.f32 %v725, %v728
    %vm730 = vweird.f32 %v724
    %vm731 = vweird.f32 %v725
    %vm732 = vmor %vm730, %vm731
    %v733 = vsel %vm732, %v725, %v729
    %v734 = vand.u32 2147483647, %v724
    %vm735 = vcmp.eq.f32.partialorder %v734, 8.507059e+37
    %v736 = vand.u32 %v724, 2147483648
    %v737 = vor.u32 1.1754944e-38, %v736
    %v738 = vsel %vm735, %v737, %v733
    %v739 = vmul.f32 1.0, %v738
    %v740 = vmul.f32 %v708, %v739
    %v741 = vadd.f32 %v643, %v740
    %v742 = vmul.f32 %v741, 0.70710677
    %s743 = scalar_lea.vmem [#allocation2], 112
    %v744 = vld [vmem:[%s743] sm:$0xff]
    %s745 = scalar_lea.vmem [#allocation2], 120
    %v746 = vld [vmem:[%s745] sm:$0xff]
    %v748 = vsel %vm57, %v742, 0
    %v751 = vsel %vm57, %v744, 0
    %753 = vmatpush.xpose.msra.mxu0 0.0
    %754 = vmatpush.xpose.msra.mxu0 0.0
    %755 = vmatpush.xpose.msra.mxu0 0.0
    %756 = vmatpush.xpose.msra.mxu0 0.0
    %757 = vmatpush.xpose.msra.mxu0 0.0
    %758 = vmatpush.xpose.msra.mxu0 0.0
    %759 = vmatpush.xpose.msra.mxu0 0.0
    %760 = vmatpush.xpose.msra.mxu0 0.0
    %761 = vmatpush.xpose.msra.mxu0 0.0
    %762 = vmatpush.xpose.msra.mxu0 0.0
    %763 = vmatpush.xpose.msra.mxu0 0.0
    %764 = vmatpush.xpose.msra.mxu0 0.0
    %765 = vmatpush.xpose.msra.mxu0 0.0
    %766 = vmatpush.xpose.msra.mxu0 0.0
    %767 = vmatpush.xpose.msra.mxu0 0.0
    %768 = vmatpush.xpose.msra.mxu0 %v751
    %769 = vmatmul.f32.gmra.mxu0 %v748
    %v770 = vpop.f32.mrf.mxu0
    %v771 = vadd.f32 0.0, %v770
    %772 = vdwg.mxu0
    %v774 = vsel %vm57, %v746, 0
    %776 = vmatpush.xpose.msra.mxu0 0.0
    %777 = vmatpush.xpose.msra.mxu0 0.0
    %778 = vmatpush.xpose.msra.mxu0 0.0
    %779 = vmatpush.xpose.msra.mxu0 0.0
    %780 = vmatpush.xpose.msra.mxu0 0.0
    %781 = vmatpush.xpose.msra.mxu0 0.0
    %782 = vmatpush.xpose.msra.mxu0 0.0
    %783 = vmatpush.xpose.msra.mxu0 0.0
    %784 = vmatpush.xpose.msra.mxu0 0.0
    %785 = vmatpush.xpose.msra.mxu0 0.0
    %786 = vmatpush.xpose.msra.mxu0 0.0
    %787 = vmatpush.xpose.msra.mxu0 0.0
    %788 = vmatpush.xpose.msra.mxu0 0.0
    %789 = vmatpush.xpose.msra.mxu0 0.0
    %790 = vmatpush.xpose.msra.mxu0 0.0
    %791 = vmatpush.xpose.msra.mxu0 %v774
    %792 = vmatmul.f32.gmra.mxu0 %v748
    %v793 = vpop.f32.mrf.mxu0
    %v794 = vadd.f32 0.0, %v793
    %795 = vdwg.mxu0
    %s796 = scalar_lea.vmem %s2, 14
    %v797 = vld [vmem:[%s796] sm:$0x1]
    %v799 = vperm.slane %v797, 0
    %v801 = vmul.f32 %v771, %v799
    %s802 = scalar_lea.vmem [#allocation5], 14
    %v803 = vld [vmem:[%s802] sm:$0x1]
    %v805 = vperm.slane %v803, 0
    %v807 = vadd.f32 %v801, %v805
    %s808 = scalar_lea.vmem %s2, 15
    %v809 = vld [vmem:[%s808] sm:$0x1]
    %v811 = vperm.slane %v809, 0
    %v813 = vmul.f32 %v794, %v811
    %s814 = scalar_lea.vmem [#allocation5], 15
    %v815 = vld [vmem:[%s814] sm:$0x1]
    %v817 = vperm.slane %v815, 0
    %v819 = vadd.f32 %v813, %v817
    %v820 = vxor.u32 %v819, 2147483648
    %v821 = vmul.f32 %v820, 1.442695
    %v822 = vpow.pop %v821
    %v823 = vadd.f32 %v822, 1.0
    %v824 = vrcp.pop %v823
    %v825 = vmul.f32 %v823, %v824
    %v826 = vsub.f32 1.0, %v825
    %v827 = vmul.f32 %v824, %v826
    %v828 = vadd.f32 %v824, %v827
    %vm829 = vweird.f32 %v823
    %vm830 = vweird.f32 %v824
    %vm831 = vmor %vm829, %vm830
    %v832 = vsel %vm831, %v824, %v828
    %v833 = vand.u32 2147483647, %v823
    %vm834 = vcmp.eq.f32.partialorder %v833, 8.507059e+37
    %v835 = vand.u32 %v823, 2147483648
    %v836 = vor.u32 1.1754944e-38, %v835
    %v837 = vsel %vm834, %v836, %v832
    %v838 = vmul.f32 1.0, %v837
    %v839 = vmul.f32 %v807, %v838
    %v840 = vadd.f32 %v742, %v839
    %v841 = vmul.f32 %v840, 0.70710677
    %v842 = vadd.f32 %v445, %v841
    %s843 = scalar_lea.vmem %s0, 8
    %v844 = vld [vmem:[%s843] sm:$0x7]
    %s845 = scalar_lea.vmem [#allocation2], 128
    %v846 = vld [vmem:[%s845] sm:$0xff]
    %s847 = scalar_lea.vmem [#allocation2], 136
    %v848 = vld [vmem:[%s847] sm:$0xff]
    %v850 = vsel %vm57, %v844, 0
    %v853 = vsel %vm57, %v846, 0
    %855 = vmatpush.xpose.msra.mxu0 0.0
    %856 = vmatpush.xpose.msra.mxu0 0.0
    %857 = vmatpush.xpose.msra.mxu0 0.0
    %858 = vmatpush.xpose.msra.mxu0 0.0
    %859 = vmatpush.xpose.msra.mxu0 0.0
    %860 = vmatpush.xpose.msra.mxu0 0.0
    %861 = vmatpush.xpose.msra.mxu0 0.0
    %862 = vmatpush.xpose.msra.mxu0 0.0
    %863 = vmatpush.xpose.msra.mxu0 0.0
    %864 = vmatpush.xpose.msra.mxu0 0.0
    %865 = vmatpush.xpose.msra.mxu0 0.0
    %866 = vmatpush.xpose.msra.mxu0 0.0
    %867 = vmatpush.xpose.msra.mxu0 0.0
    %868 = vmatpush.xpose.msra.mxu0 0.0
    %869 = vmatpush.xpose.msra.mxu0 0.0
    %870 = vmatpush.xpose.msra.mxu0 %v853
    %871 = vmatmul.f32.gmra.mxu0 %v850
    %v872 = vpop.f32.mrf.mxu0
    %v873 = vadd.f32 0.0, %v872
    %874 = vdwg.mxu0
    %v876 = vsel %vm57, %v848, 0
    %878 = vmatpush.xpose.msra.mxu0 0.0
    %879 = vmatpush.xpose.msra.mxu0 0.0
    %880 = vmatpush.xpose.msra.mxu0 0.0
    %881 = vmatpush.xpose.msra.mxu0 0.0
    %882 = vmatpush.xpose.msra.mxu0 0.0
    %883 = vmatpush.xpose.msra.mxu0 0.0
    %884 = vmatpush.xpose.msra.mxu0 0.0
    %885 = vmatpush.xpose.msra.mxu0 0.0
    %886 = vmatpush.xpose.msra.mxu0 0.0
    %887 = vmatpush.xpose.msra.mxu0 0.0
    %888 = vmatpush.xpose.msra.mxu0 0.0
    %889 = vmatpush.xpose.msra.mxu0 0.0
    %890 = vmatpush.xpose.msra.mxu0 0.0
    %891 = vmatpush.xpose.msra.mxu0 0.0
    %892 = vmatpush.xpose.msra.mxu0 0.0
    %893 = vmatpush.xpose.msra.mxu0 %v876
    %894 = vmatmul.f32.gmra.mxu0 %v850
    %v895 = vpop.f32.mrf.mxu0
    %v896 = vadd.f32 0.0, %v895
    %897 = vdwg.mxu0
    %s898 = scalar_lea.vmem %s2, 16
    %v899 = vld [vmem:[%s898] sm:$0x1]
    %v901 = vperm.slane %v899, 0
    %v903 = vmul.f32 %v873, %v901
    %s904 = scalar_lea.vmem [#allocation5], 16
    %v905 = vld [vmem:[%s904] sm:$0x1]
    %v907 = vperm.slane %v905, 0
    %v909 = vadd.f32 %v903, %v907
    %s910 = scalar_lea.vmem %s2, 17
    %v911 = vld [vmem:[%s910] sm:$0x1]
    %v913 = vperm.slane %v911, 0
    %v915 = vmul.f32 %v896, %v913
    %s916 = scalar_lea.vmem [#allocation5], 17
    %v917 = vld [vmem:[%s916] sm:$0x1]
    %v919 = vperm.slane %v917, 0
    %v921 = vadd.f32 %v915, %v919
    %v922 = vxor.u32 %v921, 2147483648
    %v923 = vmul.f32 %v922, 1.442695
    %v924 = vpow.pop %v923
    %v925 = vadd.f32 %v924, 1.0
    %v926 = vrcp.pop %v925
    %v927 = vmul.f32 %v925, %v926
    %v928 = vsub.f32 1.0, %v927
    %v929 = vmul.f32 %v926, %v928
    %v930 = vadd.f32 %v926, %v929
    %vm931 = vweird.f32 %v925
    %vm932 = vweird.f32 %v926
    %vm933 = vmor %vm931, %vm932
    %v934 = vsel %vm933, %v926, %v930
    %v935 = vand.u32 2147483647, %v925
    %vm936 = vcmp.eq.f32.partialorder %v935, 8.507059e+37
    %v937 = vand.u32 %v925, 2147483648
    %v938 = vor.u32 1.1754944e-38, %v937
    %v939 = vsel %vm936, %v938, %v934
    %v940 = vmul.f32 1.0, %v939
    %v941 = vmul.f32 %v909, %v940
    %s942 = scalar_lea.vmem [#allocation2], 144
    %v943 = vld [vmem:[%s942] sm:$0xff]
    %s944 = scalar_lea.vmem [#allocation2], 152
    %v945 = vld [vmem:[%s944] sm:$0xff]
    %v947 = vsel %vm57, %v941, 0
    %v950 = vsel %vm57, %v943, 0
    %952 = vmatpush.xpose.msra.mxu0 0.0
    %953 = vmatpush.xpose.msra.mxu0 0.0
    %954 = vmatpush.xpose.msra.mxu0 0.0
    %955 = vmatpush.xpose.msra.mxu0 0.0
    %956 = vmatpush.xpose.msra.mxu0 0.0
    %957 = vmatpush.xpose.msra.mxu0 0.0
    %958 = vmatpush.xpose.msra.mxu0 0.0
    %959 = vmatpush.xpose.msra.mxu0 0.0
    %960 = vmatpush.xpose.msra.mxu0 0.0
    %961 = vmatpush.xpose.msra.mxu0 0.0
    %962 = vmatpush.xpose.msra.mxu0 0.0
    %963 = vmatpush.xpose.msra.mxu0 0.0
    %964 = vmatpush.xpose.msra.mxu0 0.0
    %965 = vmatpush.xpose.msra.mxu0 0.0
    %966 = vmatpush.xpose.msra.mxu0 0.0
    %967 = vmatpush.xpose.msra.mxu0 %v950
    %968 = vmatmul.f32.gmra.mxu0 %v947
    %v969 = vpop.f32.mrf.mxu0
    %v970 = vadd.f32 0.0, %v969
    %971 = vdwg.mxu0
    %v973 = vsel %vm57, %v945, 0
    %975 = vmatpush.xpose.msra.mxu0 0.0
    %976 = vmatpush.xpose.msra.mxu0 0.0
    %977 = vmatpush.xpose.msra.mxu0 0.0
    %978 = vmatpush.xpose.msra.mxu0 0.0
    %979 = vmatpush.xpose.msra.mxu0 0.0
    %980 = vmatpush.xpose.msra.mxu0 0.0
    %981 = vmatpush.xpose.msra.mxu0 0.0
    %982 = vmatpush.xpose.msra.mxu0 0.0
    %983 = vmatpush.xpose.msra.mxu0 0.0
    %984 = vmatpush.xpose.msra.mxu0 0.0
    %985 = vmatpush.xpose.msra.mxu0 0.0
    %986 = vmatpush.xpose.msra.mxu0 0.0
    %987 = vmatpush.xpose.msra.mxu0 0.0
    %988 = vmatpush.xpose.msra.mxu0 0.0
    %989 = vmatpush.xpose.msra.mxu0 0.0
    %990 = vmatpush.xpose.msra.mxu0 %v973
    %991 = vmatmul.f32.gmra.mxu0 %v947
    %v992 = vpop.f32.mrf.mxu0
    %v993 = vadd.f32 0.0, %v992
    %994 = vdwg.mxu0
    %s995 = scalar_lea.vmem %s2, 18
    %v996 = vld [vmem:[%s995] sm:$0x1]
    %v998 = vperm.slane %v996, 0
    %v1000 = vmul.f32 %v970, %v998
    %s1001 = scalar_lea.vmem [#allocation5], 18
    %v1002 = vld [vmem:[%s1001] sm:$0x1]
    %v1004 = vperm.slane %v1002, 0
    %v1006 = vadd.f32 %v1000, %v1004
    %s1007 = scalar_lea.vmem %s2, 19
    %v1008 = vld [vmem:[%s1007] sm:$0x1]
    %v1010 = vperm.slane %v1008, 0
    %v1012 = vmul.f32 %v993, %v1010
    %s1013 = scalar_lea.vmem [#allocation5], 19
    %v1014 = vld [vmem:[%s1013] sm:$0x1]
    %v1016 = vperm.slane %v1014, 0
    %v1018 = vadd.f32 %v1012, %v1016
    %v1019 = vxor.u32 %v1018, 2147483648
    %v1020 = vmul.f32 %v1019, 1.442695
    %v1021 = vpow.pop %v1020
    %v1022 = vadd.f32 %v1021, 1.0
    %v1023 = vrcp.pop %v1022
    %v1024 = vmul.f32 %v1022, %v1023
    %v1025 = vsub.f32 1.0, %v1024
    %v1026 = vmul.f32 %v1023, %v1025
    %v1027 = vadd.f32 %v1023, %v1026
    %vm1028 = vweird.f32 %v1022
    %vm1029 = vweird.f32 %v1023
    %vm1030 = vmor %vm1028, %vm1029
    %v1031 = vsel %vm1030, %v1023, %v1027
    %v1032 = vand.u32 2147483647, %v1022
    %vm1033 = vcmp.eq.f32.partialorder %v1032, 8.507059e+37
    %v1034 = vand.u32 %v1022, 2147483648
    %v1035 = vor.u32 1.1754944e-38, %v1034
    %v1036 = vsel %vm1033, %v1035, %v1031
    %v1037 = vmul.f32 1.0, %v1036
    %v1038 = vmul.f32 %v1006, %v1037
    %v1039 = vadd.f32 %v941, %v1038
    %v1040 = vmul.f32 %v1039, 0.70710677
    %s1041 = scalar_lea.vmem [#allocation2], 160
    %v1042 = vld [vmem:[%s1041] sm:$0xff]
    %s1043 = scalar_lea.vmem [#allocation2], 168
    %v1044 = vld [vmem:[%s1043] sm:$0xff]
    %v1046 = vsel %vm57, %v1040, 0
    %v1049 = vsel %vm57, %v1042, 0
    %1051 = vmatpush.xpose.msra.mxu0 0.0
    %1052 = vmatpush.xpose.msra.mxu0 0.0
    %1053 = vmatpush.xpose.msra.mxu0 0.0
    %1054 = vmatpush.xpose.msra.mxu0 0.0
    %1055 = vmatpush.xpose.msra.mxu0 0.0
    %1056 = vmatpush.xpose.msra.mxu0 0.0
    %1057 = vmatpush.xpose.msra.mxu0 0.0
    %1058 = vmatpush.xpose.msra.mxu0 0.0
    %1059 = vmatpush.xpose.msra.mxu0 0.0
    %1060 = vmatpush.xpose.msra.mxu0 0.0
    %1061 = vmatpush.xpose.msra.mxu0 0.0
    %1062 = vmatpush.xpose.msra.mxu0 0.0
    %1063 = vmatpush.xpose.msra.mxu0 0.0
    %1064 = vmatpush.xpose.msra.mxu0 0.0
    %1065 = vmatpush.xpose.msra.mxu0 0.0
    %1066 = vmatpush.xpose.msra.mxu0 %v1049
    %1067 = vmatmul.f32.gmra.mxu0 %v1046
    %v1068 = vpop.f32.mrf.mxu0
    %v1069 = vadd.f32 0.0, %v1068
    %1070 = vdwg.mxu0
    %v1072 = vsel %vm57, %v1044, 0
    %1074 = vmatpush.xpose.msra.mxu0 0.0
    %1075 = vmatpush.xpose.msra.mxu0 0.0
    %1076 = vmatpush.xpose.msra.mxu0 0.0
    %1077 = vmatpush.xpose.msra.mxu0 0.0
    %1078 = vmatpush.xpose.msra.mxu0 0.0
    %1079 = vmatpush.xpose.msra.mxu0 0.0
    %1080 = vmatpush.xpose.msra.mxu0 0.0
    %1081 = vmatpush.xpose.msra.mxu0 0.0
    %1082 = vmatpush.xpose.msra.mxu0 0.0
    %1083 = vmatpush.xpose.msra.mxu0 0.0
    %1084 = vmatpush.xpose.msra.mxu0 0.0
    %1085 = vmatpush.xpose.msra.mxu0 0.0
    %1086 = vmatpush.xpose.msra.mxu0 0.0
    %1087 = vmatpush.xpose.msra.mxu0 0.0
    %1088 = vmatpush.xpose.msra.mxu0 0.0
    %1089 = vmatpush.xpose.msra.mxu0 %v1072
    %1090 = vmatmul.f32.gmra.mxu0 %v1046
    %v1091 = vpop.f32.mrf.mxu0
    %v1092 = vadd.f32 0.0, %v1091
    %1093 = vdwg.mxu0
    %s1094 = scalar_lea.vmem %s2, 20
    %v1095 = vld [vmem:[%s1094] sm:$0x1]
    %v1097 = vperm.slane %v1095, 0
    %v1099 = vmul.f32 %v1069, %v1097
    %s1100 = scalar_lea.vmem [#allocation5], 20
    %v1101 = vld [vmem:[%s1100] sm:$0x1]
    %v1103 = vperm.slane %v1101, 0
    %v1105 = vadd.f32 %v1099, %v1103
    %s1106 = scalar_lea.vmem %s2, 21
    %v1107 = vld [vmem:[%s1106] sm:$0x1]
    %v1109 = vperm.slane %v1107, 0
    %v1111 = vmul.f32 %v1092, %v1109
    %s1112 = scalar_lea.vmem [#allocation5], 21
    %v1113 = vld [vmem:[%s1112] sm:$0x1]
    %v1115 = vperm.slane %v1113, 0
    %v1117 = vadd.f32 %v1111, %v1115
    %v1118 = vxor.u32 %v1117, 2147483648
    %v1119 = vmul.f32 %v1118, 1.442695
    %v1120 = vpow.pop %v1119
    %v1121 = vadd.f32 %v1120, 1.0
    %v1122 = vrcp.pop %v1121
    %v1123 = vmul.f32 %v1121, %v1122
    %v1124 = vsub.f32 1.0, %v1123
    %v1125 = vmul.f32 %v1122, %v1124
    %v1126 = vadd.f32 %v1122, %v1125
    %vm1127 = vweird.f32 %v1121
    %vm1128 = vweird.f32 %v1122
    %vm1129 = vmor %vm1127, %vm1128
    %v1130 = vsel %vm1129, %v1122, %v1126
    %v1131 = vand.u32 2147483647, %v1121
    %vm1132 = vcmp.eq.f32.partialorder %v1131, 8.507059e+37
    %v1133 = vand.u32 %v1121, 2147483648
    %v1134 = vor.u32 1.1754944e-38, %v1133
    %v1135 = vsel %vm1132, %v1134, %v1130
    %v1136 = vmul.f32 1.0, %v1135
    %v1137 = vmul.f32 %v1105, %v1136
    %v1138 = vadd.f32 %v1040, %v1137
    %v1139 = vmul.f32 %v1138, 0.70710677
    %s1140 = scalar_lea.vmem [#allocation2], 176
    %v1141 = vld [vmem:[%s1140] sm:$0xff]
    %s1142 = scalar_lea.vmem [#allocation2], 184
    %v1143 = vld [vmem:[%s1142] sm:$0xff]
    %v1145 = vsel %vm57, %v1139, 0
    %v1148 = vsel %vm57, %v1141, 0
    %1150 = vmatpush.xpose.msra.mxu0 0.0
    %1151 = vmatpush.xpose.msra.mxu0 0.0
    %1152 = vmatpush.xpose.msra.mxu0 0.0
    %1153 = vmatpush.xpose.msra.mxu0 0.0
    %1154 = vmatpush.xpose.msra.mxu0 0.0
    %1155 = vmatpush.xpose.msra.mxu0 0.0
    %1156 = vmatpush.xpose.msra.mxu0 0.0
    %1157 = vmatpush.xpose.msra.mxu0 0.0
    %1158 = vmatpush.xpose.msra.mxu0 0.0
    %1159 = vmatpush.xpose.msra.mxu0 0.0
    %1160 = vmatpush.xpose.msra.mxu0 0.0
    %1161 = vmatpush.xpose.msra.mxu0 0.0
    %1162 = vmatpush.xpose.msra.mxu0 0.0
    %1163 = vmatpush.xpose.msra.mxu0 0.0
    %1164 = vmatpush.xpose.msra.mxu0 0.0
    %1165 = vmatpush.xpose.msra.mxu0 %v1148
    %1166 = vmatmul.f32.gmra.mxu0 %v1145
    %v1167 = vpop.f32.mrf.mxu0
    %v1168 = vadd.f32 0.0, %v1167
    %1169 = vdwg.mxu0
    %v1171 = vsel %vm57, %v1143, 0
    %1173 = vmatpush.xpose.msra.mxu0 0.0
    %1174 = vmatpush.xpose.msra.mxu0 0.0
    %1175 = vmatpush.xpose.msra.mxu0 0.0
    %1176 = vmatpush.xpose.msra.mxu0 0.0
    %1177 = vmatpush.xpose.msra.mxu0 0.0
    %1178 = vmatpush.xpose.msra.mxu0 0.0
    %1179 = vmatpush.xpose.msra.mxu0 0.0
    %1180 = vmatpush.xpose.msra.mxu0 0.0
    %1181 = vmatpush.xpose.msra.mxu0 0.0
    %1182 = vmatpush.xpose.msra.mxu0 0.0
    %1183 = vmatpush.xpose.msra.mxu0 0.0
    %1184 = vmatpush.xpose.msra.mxu0 0.0
    %1185 = vmatpush.xpose.msra.mxu0 0.0
    %1186 = vmatpush.xpose.msra.mxu0 0.0
    %1187 = vmatpush.xpose.msra.mxu0 0.0
    %1188 = vmatpush.xpose.msra.mxu0 %v1171
    %1189 = vmatmul.f32.gmra.mxu0 %v1145
    %v1190 = vpop.f32.mrf.mxu0
    %v1191 = vadd.f32 0.0, %v1190
    %1192 = vdwg.mxu0
    %s1193 = scalar_lea.vmem %s2, 22
    %v1194 = vld [vmem:[%s1193] sm:$0x1]
    %v1196 = vperm.slane %v1194, 0
    %v1198 = vmul.f32 %v1168, %v1196
    %s1199 = scalar_lea.vmem [#allocation5], 22
    %v1200 = vld [vmem:[%s1199] sm:$0x1]
    %v1202 = vperm.slane %v1200, 0
    %v1204 = vadd.f32 %v1198, %v1202
    %s1205 = scalar_lea.vmem %s2, 23
    %v1206 = vld [vmem:[%s1205] sm:$0x1]
    %v1208 = vperm.slane %v1206, 0
    %v1210 = vmul.f32 %v1191, %v1208
    %s1211 = scalar_lea.vmem [#allocation5], 23
    %v1212 = vld [vmem:[%s1211] sm:$0x1]
    %v1214 = vperm.slane %v1212, 0
    %v1216 = vadd.f32 %v1210, %v1214
    %v1217 = vxor.u32 %v1216, 2147483648
    %v1218 = vmul.f32 %v1217, 1.442695
    %v1219 = vpow.pop %v1218
    %v1220 = vadd.f32 %v1219, 1.0
    %v1221 = vrcp.pop %v1220
    %v1222 = vmul.f32 %v1220, %v1221
    %v1223 = vsub.f32 1.0, %v1222
    %v1224 = vmul.f32 %v1221, %v1223
    %v1225 = vadd.f32 %v1221, %v1224
    %vm1226 = vweird.f32 %v1220
    %vm1227 = vweird.f32 %v1221
    %vm1228 = vmor %vm1226, %vm1227
    %v1229 = vsel %vm1228, %v1221, %v1225
    %v1230 = vand.u32 2147483647, %v1220
    %vm1231 = vcmp.eq.f32.partialorder %v1230, 8.507059e+37
    %v1232 = vand.u32 %v1220, 2147483648
    %v1233 = vor.u32 1.1754944e-38, %v1232
    %v1234 = vsel %vm1231, %v1233, %v1229
    %v1235 = vmul.f32 1.0, %v1234
    %v1236 = vmul.f32 %v1204, %v1235
    %v1237 = vadd.f32 %v1139, %v1236
    %v1238 = vmul.f32 %v1237, 0.70710677
    %v1239 = vadd.f32 %v842, %v1238
    %v1240 = vld [vmem:[%s4] sm:$0xff]
    %v1241 = vld [vmem:[%s4 + $0x8] sm:$0xff]
    %v1242 = vld [vmem:[%s4 + $0x10] sm:$0xff]
    %v1243 = vld [vmem:[%s4 + $0x18] sm:$0xff]
    %v1245 = vsel %vm57, %v1239, 0
    %v1248 = vsel %vm57, %v1240, 0
    %v1251 = vsel %vm57, %v1241, 0
    %v1254 = vsel %vm57, %v1242, 0
    %v1257 = vsel %vm57, %v1243, 0
    %1259 = vmatpush.xpose.msra.mxu0 0.0
    %1260 = vmatpush.xpose.msra.mxu0 0.0
    %1261 = vmatpush.xpose.msra.mxu0 0.0
    %1262 = vmatpush.xpose.msra.mxu0 0.0
    %1263 = vmatpush.xpose.msra.mxu0 0.0
    %1264 = vmatpush.xpose.msra.mxu0 0.0
    %1265 = vmatpush.xpose.msra.mxu0 0.0
    %1266 = vmatpush.xpose.msra.mxu0 0.0
    %1267 = vmatpush.xpose.msra.mxu0 0.0
    %1268 = vmatpush.xpose.msra.mxu0 0.0
    %1269 = vmatpush.xpose.msra.mxu0 0.0
    %1270 = vmatpush.xpose.msra.mxu0 0.0
    %1271 = vmatpush.xpose.msra.mxu0 %v1257
    %1272 = vmatpush.xpose.msra.mxu0 %v1254
    %1273 = vmatpush.xpose.msra.mxu0 %v1251
    %1274 = vmatpush.xpose.msra.mxu0 %v1248
    %1275 = vmatmul.f32.gmra.mxu0 %v1245
    %v1276 = vpop.f32.mrf.mxu0
    %v1277 = vadd.f32 0.0, %v1276
    %1278 = vdwg.mxu0
    %vm1279 = vcmask 256000
    %1280 = vst.msk [vmem:[#allocation7] sm:$0x7] %vm1279, %v1277
    // Predicated region
    $region30: #{tpu_custom_call.1} parent=1 // pred_check
      _
    $region31: #{tpu_custom_call.1} parent=1 // pred_check_branch
      %1282 = sbr.rel (0) target = $region33
    $region32: #{tpu_custom_call.1} parent=1 // pred_region
      %1284 = vsyncadd [#allocation4], 0
      %s1286 = sshll.u32 [#allocation7], 4
      %s1287 = int_to_ptr.vmem [resolvable:$true] %s1286
      %s1288 = sshll.u32 %s5, 4
      %s1289 = int_to_ptr.hbm [resolvable:$true] %s1288
      %1291 = dma.vmem_to_hbm [thread:$0]  %s1287, 64, %s1289, [#allocation4]
    $region33: #{tpu_custom_call.1} parent=1 // pred_fallthru
      _
    // Predicated region
    $region34: #{tpu_custom_call.1} parent=1 // pred_check
      _
    $region35: #{tpu_custom_call.1} parent=1 // pred_check_branch
      %1293 = sbr.rel (0) target = $region37
    $region36: #{tpu_custom_call.1} parent=1 // pred_region
      %1295 = dma.done [#allocation4], 64
    $region37: #{tpu_custom_call.1} parent=1 // pred_fallthru
      _
    %1296 = vsyncpa [#allocation3], 1
    %1297 = vsyncpa [#allocation6], 1
    %1298 = vsyncpa [#allocation4], 1

</llo_original>
